<compile_context>
chip_gen: v5e
topology: v5e:2x2
jax: 0.10.0
libtpu: 0.0.40
codegen_flags: <defaults>
</compile_context>

<pallas_src>
import functools
import numpy as np
import jax
import jax.numpy as jnp
from jax import lax
from jax.experimental import pallas as pl
from jax.experimental.pallas import tpu as pltpu


# --------------------------------------------------------------------------- traced helpers

def _mish(x):
    # Mish(x) = x * tanh(softplus(x)); stable softplus = max(x,0) + log(1 + exp(-|x|))
    sp = jnp.maximum(x, 0.0) + jnp.log(1.0 + jnp.exp(-jnp.abs(x)))
    return x * jnp.tanh(sp)


def _conv1d_same_bt(x, w_taps, bias):
    """Batch-aware 'same' 1-D conv over time.

    K accumulated tap matmuls (f32 accumulator) instead of a (B, T, K*Cin) im2col tensor.
    x: (B, T, Cin) f32, w_taps: (K, Cin, Cout) bf16, bias: (1, Cout) f32."""
    K, Cin, Cout = w_taps.shape
    B, T, _ = x.shape
    xb = x.astype(jnp.bfloat16)
    if K == 1:
        y = jnp.dot(xb.reshape(B * T, Cin), w_taps[0],
                    preferred_element_type=jnp.float32)
    else:
        pad = (K - 1) // 2
        z = jnp.zeros((B, pad, Cin), jnp.bfloat16)
        xp = jnp.concatenate([z, xb, z], axis=1)               # (B, T+2p, Cin), one small pad
        y = jnp.zeros((B * T, Cout), jnp.float32)
        for j in range(K):                                     # static unroll; each tap = 1 matmul
            y = y + jnp.dot(xp[:, j:j + T, :].reshape(B * T, Cin), w_taps[j],
                            preferred_element_type=jnp.float32)
    return y.reshape(B, T, Cout) + bias.reshape(1, 1, Cout)


def _saln_bt(y, gb, d, eps=1e-12):
    """Style-Adaptive LayerNorm.  y: (B,T,D) f32, gb: (B, 2D) = [bias | gain] (split order
    matches torch.split of the affine output).  torch.std is unbiased; tiny eps inside the
    sqrt only guards zero-variance rows (use exact (std) division for strict parity)."""
    mu = jnp.mean(y, axis=-1, keepdims=True)
    diff = y - mu
    var = jnp.sum(diff * diff, axis=-1, keepdims=True) * (1.0 / (d - 1))
    yn = diff * lax.rsqrt(var + eps)
    b = gb[:, None, :d]
    g = gb[:, None, d:]
    return g * yn + b


# --------------------------------------------------------------------------- fused kernel

def _encoder_kernel(x_emb_ref, pos_ref, vcol_ref, kbias_ref,
                    c1w_ref, c1b_ref, c2w_ref, c2b_ref, fcw_ref,
                    wqkv_ref, wo_ref, gb0_ref, gb1_ref,
                    f1w_ref, f1b_ref, f2w_ref, f2b_ref,
                    out_ref, *, n_head, d_k, d_v, d_model):
    layer = pl.program_id(1)                              # inner (sequential) grid axis
    Bt, T, D = out_ref.shape

    valid_col = vcol_ref[...]                             # (Bt, T, 1)  1.0 = valid position
    key_bias = kbias_ref[...]                             # (Bt, 1, T)  0 valid / -1e9 padded key

    # ---- layer 0: PhonemePreNet + positional encoding (embedding gathered outside) ----
    @pl.when(layer == 0)
    def _front():
        x = x_emb_ref[...]                                # (Bt, T, D) f32, residual
        h = _mish(_conv1d_same_bt(x, c1w_ref[...], c1b_ref[...]))
        h = _mish(_conv1d_same_bt(h, c2w_ref[...], c2b_ref[...]))
        h = jnp.dot(h.reshape(Bt * T, D).astype(jnp.bfloat16), fcw_ref[...],
                    preferred_element_type=jnp.float32).reshape(Bt, T, D)
        h = h * valid_col                                 # masked_fill(mask, 0)
        out_ref[...] = x + h + pos_ref[...][None, :, :]   # prenet residual + position_enc

    # ---- SALNFFTBlock `layer` (per-layer weights streamed via layer-indexed BlockSpecs) ----
    x = out_ref[...]                                      # VMEM-resident layer carry
    x2d = x.reshape(Bt * T, D)
    xb = x2d.astype(jnp.bfloat16)

    gb0 = gb0_ref[0, :, 0, :]                             # (Bt, 2D) precomputed [bias|gain]
    gb1 = gb1_ref[0, :, 0, :]

    # fused QKV projection: one wide matmul for all heads
    qkv = jnp.dot(xb, wqkv_ref[0], preferred_element_type=jnp.float32)   # (Bt*T, H*(2dk+dv))
    inv_temp = 1.0 / (float(d_k) ** 0.5)
    k_off = n_head * d_k
    v_off = 2 * n_head * d_k
    ctx = []
    for h in range(n_head):                               # static unroll; only tiny einsums per head
        q3 = qkv[:, h * d_k:(h + 1) * d_k].reshape(Bt, T, d_k).astype(jnp.bfloat16)
        k3 = qkv[:, k_off + h * d_k:k_off + (h + 1) * d_k].reshape(Bt, T, d_k).astype(jnp.bfloat16)
        v3 = qkv[:, v_off + h * d_v:v_off + (h + 1) * d_v].reshape(Bt, T, d_v).astype(jnp.bfloat16)
        s = jnp.einsum('bqd,bkd->bqk', q3, k3,
                       preferred_element_type=jnp.float32) * inv_temp    # (Bt, T, T)
        s = s + key_bias                                  # masked_fill on padded keys
        s = s - jnp.max(s, axis=-1, keepdims=True)
        p = jnp.exp(s)
        p = p * pl.reciprocal(jnp.sum(p, axis=-1, keepdims=True), approx=True)  # softmax (EUP)
        ctx.append(jnp.einsum('bqk,bkd->bqd', p.astype(jnp.bfloat16), v3,
                              preferred_element_type=jnp.float32))        # (Bt, T, d_v)
    ctx2d = jnp.concatenate(ctx, axis=-1).reshape(Bt * T, n_head * d_v).astype(jnp.bfloat16)
    # fused output projection + residual
    y = (x2d + jnp.dot(ctx2d, wo_ref[0],
                       preferred_element_type=jnp.float32)).reshape(Bt, T, D)

    # SALN 0 + mask
    y = _saln_bt(y, gb0, d_model) * valid_col

    # position-wise conv feed-forward (k=[K1,K2], ReLU) + residual
    hdn = jnp.maximum(_conv1d_same_bt(y, f1w_ref[0], f1b_ref[0]), 0.0)
    y = _conv1d_same_bt(hdn, f2w_ref[0], f2b_ref[0]) + y

    # SALN 1 + mask
    y = _saln_bt(y, gb1, d_model) * valid_col

    out_ref[...] = y                                      # carry; HBM writeback at tile end


# --------------------------------------------------------------------------- wrapper

def _vmem_limit_bytes(bt, T, D, d_inner, n_head, d_k, d_v, pre_k, ffn_k):
    """Explicit scoped-VMEM budget from the resident set (double-buffered streamed weights,
    carried activation, temporaries), clamped so it is safe on v5e/v6e (128 MiB physical)
    and v7x (64 MiB physical)."""
    f32, bf16 = 4, 2
    act = bt * T * D * f32
    hq = n_head * (2 * d_k + d_v)
    resident = (
        act                                                    # output block (layer carry)
        + 2 * act                                              # double-buffered x_emb block
        + 2 * 2 * bt * T * f32                                 # valid_col + key_bias blocks
        + 2 * (T * D * f32                                     # pos table
               + 2 * pre_k * D * D * bf16 + D * D * bf16 + 2 * D * f32)   # prenet weights
        + 2 * (D * hq * bf16 + n_head * d_v * D * bf16         # fused attn weights
               + 2 * bt * 2 * D * f32                          # gb0 / gb1
               + ffn_k[0] * D * d_inner * bf16 + ffn_k[1] * d_inner * D * bf16
               + (d_inner + D) * f32))
    temporaries = (bt * T * hq * f32 + 4 * bt * T * T * f32
                   + 4 * bt * T * max(D, d_inner) * f32
                   + bt * (T + ffn_k[0]) * max(D, d_inner) * bf16)
    est = resident + temporaries
    return int(max(32 << 20, min(56 << 20, 2 * est)))


def phoneme_encoder_forward(src_seq, w_style, mask, params, pos_table,
                            *, n_head, d_k, d_v, batch_tile=1):
    """src_seq: (B, T) int32, w_style: (B, 1, d_w), mask: (B, T) bool (True = padded)."""
    B, T = src_seq.shape
    D = params["emb"].shape[1]
    n_layers = params["wqkv"].shape[0]
    d_w = w_style.shape[-1]
    d_inner = params["ffn_w1"].shape[-1]
    ffn_k = (params["ffn_w1"].shape[1], params["ffn_w2"].shape[1])
    pre_k = params["pre_c1_w"].shape[0]
    hq = n_head * (2 * d_k + d_v)
    assert B % batch_tile == 0
    bt = batch_tile

    # masks built once in the wrapper (exact masked_fill semantics, any padding pattern)
    valid = jnp.logical_not(mask).astype(jnp.float32)                    # (B, T)
    valid_col = valid[:, :, None]                                        # (B, T, 1)
    key_bias = ((valid - 1.0) * 1e9)[:, None, :]                         # (B, 1, T)

    x_emb = jnp.take(params["emb"], src_seq.astype(jnp.int32), axis=0)   # (B, T, D) f32
    pos = pos_table[:T]                                                  # (T, D) f32

    # precompute style [bias|gain] for every layer / both SALNs -> streamed per layer
    style2d = w_style.reshape(B, d_w).astype(jnp.float32)
    gb0_all = jnp.einsum('bw,lwd->lbd', style2d,
                         params["saln0"].astype(jnp.float32)).reshape(n_layers, B, 1, 2 * D)
    gb1_all = jnp.einsum('bw,lwd->lbd', style2d,
                         params["saln1"].astype(jnp.float32)).reshape(n_layers, B, 1, 2 * D)

    # index maps: grid = (batch_tiles, n_layers)
    bsel3 = lambda b, l: (b, 0, 0)           # per-batch-tile tensors
    lsel3 = lambda b, l: (l, 0, 0)           # per-layer weights
    lsel4 = lambda b, l: (l, 0, 0, 0)
    gbsel = lambda b, l: (l, b, 0, 0)        # per-layer, per-batch-tile style proj
    const2 = lambda b, l: (0, 0)             # grid-invariant small tensors
    const3 = lambda b, l: (0, 0, 0)

    kernel = functools.partial(_encoder_kernel, n_head=n_head, d_k=d_k, d_v=d_v, d_model=D)

    return pl.pallas_call(
        kernel,
        out_shape=jax.ShapeDtypeStruct((B, T, D), jnp.float32),
        grid=(B // bt, n_layers),
        in_specs=[
            pl.BlockSpec((bt, T, D), bsel3),                              # embedded input
            pl.BlockSpec((T, D), const2),                                 # positional table
            pl.BlockSpec((bt, T, 1), bsel3),                              # valid_col mask
            pl.BlockSpec((bt, 1, T), bsel3),                              # key_bias mask
            pl.BlockSpec(params["pre_c1_w"].shape, const3),               # prenet (invariant)
            pl.BlockSpec(params["pre_c1_b"].shape, const2),
            pl.BlockSpec(params["pre_c2_w"].shape, const3),
            pl.BlockSpec(params["pre_c2_b"].shape, const2),
            pl.BlockSpec(params["pre_fc_w"].shape, const2),
            pl.BlockSpec((1, D, hq), lsel3),                              # fused QKV weights
            pl.BlockSpec((1, n_head * d_v, D), lsel3),                    # fused output proj
            pl.BlockSpec((1, bt, 1, 2 * D), gbsel),                       # SALN0 [bias|gain]
            pl.BlockSpec((1, bt, 1, 2 * D), gbsel),                       # SALN1 [bias|gain]
            pl.BlockSpec((1, ffn_k[0], D, d_inner), lsel4),               # FFN conv1 taps
            pl.BlockSpec((1, 1, d_inner), lsel3),
            pl.BlockSpec((1, ffn_k[1], d_inner, D), lsel4),               # FFN conv2 taps
            pl.BlockSpec((1, 1, D), lsel3),
        ],
        out_specs=pl.BlockSpec((bt, T, D), bsel3),        # constant over layer axis -> VMEM carry
        compiler_params=pltpu.CompilerParams(
            dimension_semantics=("parallel", "arbitrary"),   # batch parallel (v7x 2 TCs), layers carry
            vmem_limit_bytes=_vmem_limit_bytes(bt, T, D, d_inner, n_head, d_k, d_v, pre_k, ffn_k),
        ),
    )(x_emb, pos, valid_col, key_bias,
      params["pre_c1_w"], params["pre_c1_b"],
      params["pre_c2_w"], params["pre_c2_b"], params["pre_fc_w"],
      params["wqkv"], params["wo"], gb0_all, gb1_all,
      params["ffn_w1"], params["ffn_b1"], params["ffn_w2"], params["ffn_b2"])


# --------------------------------------------------------------------------- params / tables

def get_sinusoid_encoding_table(n_position, d_hid):
    def cal_angle(position, hid_idx):
        return position / np.power(10000, 2 * (hid_idx // 2) / d_hid)
    table = np.array([[cal_angle(pos, j) for j in range(d_hid)]
                      for pos in range(n_position)], dtype=np.float64)
    table[:, 0::2] = np.sin(table[:, 0::2])
    table[:, 1::2] = np.cos(table[:, 1::2])
    return jnp.asarray(table, dtype=jnp.float32)


def init_params(key, *, n_vocab, d_model, d_w, n_head, d_k, d_v, d_inner,
                pre_k, ffn_k, n_layers):
    keys = iter(jax.random.split(key, 64))

    def nrm(shape, scale=0.1, dtype=jnp.bfloat16):
        return (jax.random.normal(next(keys), shape, jnp.float32) * scale).astype(dtype)

    emb = jax.random.normal(next(keys), (n_vocab, d_model), jnp.float32) * 0.1
    emb = emb.at[0].set(0.0)                                  # padding_idx=0 -> zero row
    hq = n_head * (2 * d_k + d_v)                             # [Q heads | K heads | V heads]
    params = {
        "emb": emb,                                           # f32; gathered outside the kernel
        # conv weights stored as (K, Cin, Cout) taps (PyTorch (Cout, Cin, K) transposed), bf16
        "pre_c1_w": nrm((pre_k, d_model, d_model)),
        "pre_c1_b": nrm((1, d_model), dtype=jnp.float32),
        "pre_c2_w": nrm((pre_k, d_model, d_model)),
        "pre_c2_b": nrm((1, d_model), dtype=jnp.float32),
        "pre_fc_w": nrm((d_model, d_model)),                  # FCBlock, bias=False
        # per-layer weights stacked along a leading layer axis; QKV fused head-major
        "wqkv": nrm((n_layers, d_model, hq)),
        "wo": nrm((n_layers, n_head * d_v, d_model)),
        "saln0": nrm((n_layers, d_w, 2 * d_model)),           # affine -> [bias | gain]
        "saln1": nrm((n_layers, d_w, 2 * d_model)),
        "ffn_w1": nrm((n_layers, ffn_k[0], d_model, d_inner)),
        "ffn_b1": nrm((n_layers, 1, d_inner), dtype=jnp.float32),
        "ffn_w2": nrm((n_layers, ffn_k[1], d_inner, d_model)),
        "ffn_b2": nrm((n_layers, 1, d_model), dtype=jnp.float32),
    }
    return params


# --------------------------------------------------------------------------- main

if __name__ == "__main__":
    # synthetic config (small, consistent with the module's __init__)
    B, T = 2, 16
    d_model = 32
    n_head = 2
    d_k = d_v = d_model // n_head
    d_inner = 64
    d_w = 32                      # melencoder encoder_hidden
    n_layers = 2
    pre_k = 3                     # prenet conv_kernel_size
    ffn_k = (9, 1)                # transformer conv_kernel_size
    max_seq_len = 32
    n_vocab = 40                  # stands in for len(symbols) + 1

    key = jax.random.PRNGKey(0)
    kp, kids, kw = jax.random.split(key, 3)

    params = init_params(kp, n_vocab=n_vocab, d_model=d_model, d_w=d_w,
                         n_head=n_head, d_k=d_k, d_v=d_v, d_inner=d_inner,
                         pre_k=pre_k, ffn_k=ffn_k, n_layers=n_layers)
    pos_table = get_sinusoid_encoding_table(max_seq_len + 1, d_model)

    lengths = jnp.array([T, T - 4], dtype=jnp.int32)
    mask = jnp.arange(T)[None, :] >= lengths[:, None]          # True = padded position
    src_seq = jax.random.randint(kids, (B, T), 1, n_vocab)
    src_seq = jnp.where(mask, 0, src_seq)                      # pad token = 0
    w_style = jax.random.normal(kw, (B, 1, d_w), jnp.float32)  # style vector

    out = phoneme_encoder_forward(src_seq, w_style, mask, params, pos_table,
                                  n_head=n_head, d_k=d_k, d_v=d_v, batch_tile=1)
    out = jax.block_until_ready(out)
    assert out.shape == (B, T, d_model) and bool(jnp.all(jnp.isfinite(out)))
    assert bool(jnp.all(jnp.abs(out[1, T - 4:]) < 1e-6))       # padded rows masked to zero
    print("KERNEL_OK")
</pallas_src>

<mosaic_0001>
module attributes {stable_mosaic.version = 11 : i64} {
  func.func @_encoder_kernel(%arg0: i32, %arg1: i32, %arg2: memref<1x16x32xf32, #tpu.memory_space<vmem>>, %arg3: memref<16x32xf32, #tpu.memory_space<vmem>>, %arg4: memref<1x16x1xf32, #tpu.memory_space<vmem>>, %arg5: memref<1x1x16xf32, #tpu.memory_space<vmem>>, %arg6: memref<3x32x32xbf16, #tpu.memory_space<vmem>>, %arg7: memref<1x32xf32, #tpu.memory_space<vmem>>, %arg8: memref<3x32x32xbf16, #tpu.memory_space<vmem>>, %arg9: memref<1x32xf32, #tpu.memory_space<vmem>>, %arg10: memref<32x32xbf16, #tpu.memory_space<vmem>>, %arg11: memref<1x32x96xbf16, #tpu.memory_space<vmem>>, %arg12: memref<1x32x32xbf16, #tpu.memory_space<vmem>>, %arg13: memref<1x1x1x64xf32, #tpu.memory_space<vmem>>, %arg14: memref<1x1x1x64xf32, #tpu.memory_space<vmem>>, %arg15: memref<1x9x32x64xbf16, #tpu.memory_space<vmem>>, %arg16: memref<1x1x64xf32, #tpu.memory_space<vmem>>, %arg17: memref<1x1x64x32xbf16, #tpu.memory_space<vmem>>, %arg18: memref<1x1x32xf32, #tpu.memory_space<vmem>>, %arg19: memref<1x16x32xf32, #tpu.memory_space<vmem>>) attributes {dimension_semantics = [#tpu.dimension_semantics<parallel>, #tpu.dimension_semantics<arbitrary>], iteration_bounds = array<i64: 2, 2>, scalar_prefetch = 0 : i64, scratch_operands = 0 : i64, tpu.core_type = #tpu.core_type<tc>, window_params = [{transform_indices = @transform_0, window_bounds = array<i64: 1, 16, 32>}, {pipeline_mode = #tpu.pipeline_mode<synchronous>, transform_indices = @transform_1, window_bounds = array<i64: 16, 32>}, {transform_indices = @transform_2, window_bounds = array<i64: 1, 16, 1>}, {transform_indices = @transform_3, window_bounds = array<i64: 1, 1, 16>}, {pipeline_mode = #tpu.pipeline_mode<synchronous>, transform_indices = @transform_4, window_bounds = array<i64: 3, 32, 32>}, {pipeline_mode = #tpu.pipeline_mode<synchronous>, transform_indices = @transform_5, window_bounds = array<i64: 1, 32>}, {pipeline_mode = #tpu.pipeline_mode<synchronous>, transform_indices = @transform_6, window_bounds = array<i64: 3, 32, 32>}, {pipeline_mode = #tpu.pipeline_mode<synchronous>, transform_indices = @transform_7, window_bounds = array<i64: 1, 32>}, {pipeline_mode = #tpu.pipeline_mode<synchronous>, transform_indices = @transform_8, window_bounds = array<i64: 32, 32>}, {transform_indices = @transform_9, window_bounds = array<i64: 1, 32, 96>}, {transform_indices = @transform_10, window_bounds = array<i64: 1, 32, 32>}, {transform_indices = @transform_11, window_bounds = array<i64: 1, 1, 1, 64>}, {transform_indices = @transform_12, window_bounds = array<i64: 1, 1, 1, 64>}, {transform_indices = @transform_13, window_bounds = array<i64: 1, 9, 32, 64>}, {transform_indices = @transform_14, window_bounds = array<i64: 1, 1, 64>}, {transform_indices = @transform_15, window_bounds = array<i64: 1, 1, 64, 32>}, {transform_indices = @transform_16, window_bounds = array<i64: 1, 1, 32>}, {transform_indices = @transform_17, window_bounds = array<i64: 1, 16, 32>}]} {
    %c0 = arith.constant 0 : index
    %c0_0 = arith.constant 0 : index
    %c0_1 = arith.constant 0 : index
    %0 = vector.load %arg4[%c0, %c0_0, %c0_1] : memref<1x16x1xf32, #tpu.memory_space<vmem>>, vector<1x16x1xf32>
    %c0_2 = arith.constant 0 : index
    %c0_3 = arith.constant 0 : index
    %c0_4 = arith.constant 0 : index
    %1 = vector.load %arg5[%c0_2, %c0_3, %c0_4] : memref<1x1x16xf32, #tpu.memory_space<vmem>>, vector<1x1x16xf32>
    %c0_i32 = arith.constant 0 : i32
    %2 = arith.cmpi eq, %arg1, %c0_i32 : i32
    %3 = arith.extui %2 : i1 to i32
    %c0_i32_5 = arith.constant 0 : i32
    %4 = arith.cmpi ne, %3, %c0_i32_5 : i32
    scf.if %4 {
      %c0_74 = arith.constant 0 : index
      %c0_75 = arith.constant 0 : index
      %c0_76 = arith.constant 0 : index
      %209 = vector.load %arg2[%c0_74, %c0_75, %c0_76] : memref<1x16x32xf32, #tpu.memory_space<vmem>>, vector<1x16x32xf32>
      %c0_77 = arith.constant 0 : index
      %c0_78 = arith.constant 0 : index
      %c0_79 = arith.constant 0 : index
      %210 = vector.load %arg6[%c0_77, %c0_78, %c0_79] : memref<3x32x32xbf16, #tpu.memory_space<vmem>>, vector<3x32x32xbf16>
      %c0_80 = arith.constant 0 : index
      %c0_81 = arith.constant 0 : index
      %211 = vector.load %arg7[%c0_80, %c0_81] : memref<1x32xf32, #tpu.memory_space<vmem>>, vector<1x32xf32>
      %212 = arith.truncf %209 : vector<1x16x32xf32> to vector<1x16x32xbf16>
      %cst_82 = arith.constant 0.000000e+00 : bf16
      %213 = vector.broadcast %cst_82 : bf16 to vector<1x1x32xbf16>
      %214 = tpu.concatenate %213, %212, %213 in 1 : vector<1x1x32xbf16>, vector<1x16x32xbf16>, vector<1x1x32xbf16> -> vector<1x18x32xbf16>
      %cst_83 = arith.constant 0.000000e+00 : f32
      %215 = vector.broadcast %cst_83 : f32 to vector<16x32xf32>
      %216 = vector.extract_strided_slice %214 {offsets = [0, 0, 0], sizes = [1, 16, 32], strides = [1, 1, 1]} : vector<1x18x32xbf16> to vector<1x16x32xbf16>
      %217 = vector.shape_cast %216 : vector<1x16x32xbf16> to vector<16x32xbf16>
      %218 = vector.extract_strided_slice %210 {offsets = [0, 0, 0], sizes = [1, 32, 32], strides = [1, 1, 1]} : vector<3x32x32xbf16> to vector<1x32x32xbf16>
      %219 = vector.shape_cast %218 : vector<1x32x32xbf16> to vector<32x32xbf16>
      %cst_84 = arith.constant dense<0.000000e+00> : vector<16x32xf32>
      %220 = tpu.matmul %217, %219, %cst_84 {dimension_numbers = #tpu.dot_dimension_numbers<[1], [0], [0], [1], [0, 0, 1, 1], [], []>} : vector<16x32xbf16>, vector<32x32xbf16>, vector<16x32xf32> -> vector<16x32xf32>
      %221 = arith.addf %215, %220 : vector<16x32xf32>
      %222 = vector.extract_strided_slice %214 {offsets = [0, 1, 0], sizes = [1, 16, 32], strides = [1, 1, 1]} : vector<1x18x32xbf16> to vector<1x16x32xbf16>
      %223 = vector.shape_cast %222 : vector<1x16x32xbf16> to vector<16x32xbf16>
      %224 = vector.extract_strided_slice %210 {offsets = [1, 0, 0], sizes = [1, 32, 32], strides = [1, 1, 1]} : vector<3x32x32xbf16> to vector<1x32x32xbf16>
      %225 = vector.shape_cast %224 : vector<1x32x32xbf16> to vector<32x32xbf16>
      %cst_85 = arith.constant dense<0.000000e+00> : vector<16x32xf32>
      %226 = tpu.matmul %223, %225, %cst_85 {dimension_numbers = #tpu.dot_dimension_numbers<[1], [0], [0], [1], [0, 0, 1, 1], [], []>} : vector<16x32xbf16>, vector<32x32xbf16>, vector<16x32xf32> -> vector<16x32xf32>
      %227 = arith.addf %221, %226 : vector<16x32xf32>
      %228 = vector.extract_strided_slice %214 {offsets = [0, 2, 0], sizes = [1, 16, 32], strides = [1, 1, 1]} : vector<1x18x32xbf16> to vector<1x16x32xbf16>
      %229 = vector.shape_cast %228 : vector<1x16x32xbf16> to vector<16x32xbf16>
      %230 = vector.extract_strided_slice %210 {offsets = [2, 0, 0], sizes = [1, 32, 32], strides = [1, 1, 1]} : vector<3x32x32xbf16> to vector<1x32x32xbf16>
      %231 = vector.shape_cast %230 : vector<1x32x32xbf16> to vector<32x32xbf16>
      %cst_86 = arith.constant dense<0.000000e+00> : vector<16x32xf32>
      %232 = tpu.matmul %229, %231, %cst_86 {dimension_numbers = #tpu.dot_dimension_numbers<[1], [0], [0], [1], [0, 0, 1, 1], [], []>} : vector<16x32xbf16>, vector<32x32xbf16>, vector<16x32xf32> -> vector<16x32xf32>
      %233 = arith.addf %227, %232 : vector<16x32xf32>
      %234 = vector.shape_cast %233 : vector<16x32xf32> to vector<1x16x32xf32>
      %235 = vector.shape_cast %211 : vector<1x32xf32> to vector<1x1x32xf32>
      %236 = vector.broadcast %235 : vector<1x1x32xf32> to vector<1x16x32xf32>
      %237 = arith.addf %234, %236 : vector<1x16x32xf32>
      %cst_87 = arith.constant 0.000000e+00 : f32
      %238 = vector.broadcast %cst_87 : f32 to vector<1x16x32xf32>
      %239 = arith.maximumf %237, %238 : vector<1x16x32xf32>
      %240 = math.absf %237 : vector<1x16x32xf32>
      %cst_88 = arith.constant 0.000000e+00 : f32
      %241 = vector.broadcast %cst_88 : f32 to vector<1x16x32xf32>
      %242 = arith.subf %241, %240 : vector<1x16x32xf32>
      %243 = math.exp %242 : vector<1x16x32xf32>
      %cst_89 = arith.constant 1.000000e+00 : f32
      %244 = vector.broadcast %cst_89 : f32 to vector<1x16x32xf32>
      %245 = arith.addf %244, %243 : vector<1x16x32xf32>
      %246 = math.log %245 : vector<1x16x32xf32>
      %247 = arith.addf %239, %246 : vector<1x16x32xf32>
      %248 = math.tanh %247 : vector<1x16x32xf32>
      %249 = arith.mulf %237, %248 : vector<1x16x32xf32>
      %c0_90 = arith.constant 0 : index
      %c0_91 = arith.constant 0 : index
      %c0_92 = arith.constant 0 : index
      %250 = vector.load %arg8[%c0_90, %c0_91, %c0_92] : memref<3x32x32xbf16, #tpu.memory_space<vmem>>, vector<3x32x32xbf16>
      %c0_93 = arith.constant 0 : index
      %c0_94 = arith.constant 0 : index
      %251 = vector.load %arg9[%c0_93, %c0_94] : memref<1x32xf32, #tpu.memory_space<vmem>>, vector<1x32xf32>
      %252 = arith.truncf %249 : vector<1x16x32xf32> to vector<1x16x32xbf16>
      %cst_95 = arith.constant 0.000000e+00 : bf16
      %253 = vector.broadcast %cst_95 : bf16 to vector<1x1x32xbf16>
      %254 = tpu.concatenate %253, %252, %253 in 1 : vector<1x1x32xbf16>, vector<1x16x32xbf16>, vector<1x1x32xbf16> -> vector<1x18x32xbf16>
      %cst_96 = arith.constant 0.000000e+00 : f32
      %255 = vector.broadcast %cst_96 : f32 to vector<16x32xf32>
      %256 = vector.extract_strided_slice %254 {offsets = [0, 0, 0], sizes = [1, 16, 32], strides = [1, 1, 1]} : vector<1x18x32xbf16> to vector<1x16x32xbf16>
      %257 = vector.shape_cast %256 : vector<1x16x32xbf16> to vector<16x32xbf16>
      %258 = vector.extract_strided_slice %250 {offsets = [0, 0, 0], sizes = [1, 32, 32], strides = [1, 1, 1]} : vector<3x32x32xbf16> to vector<1x32x32xbf16>
      %259 = vector.shape_cast %258 : vector<1x32x32xbf16> to vector<32x32xbf16>
      %cst_97 = arith.constant dense<0.000000e+00> : vector<16x32xf32>
      %260 = tpu.matmul %257, %259, %cst_97 {dimension_numbers = #tpu.dot_dimension_numbers<[1], [0], [0], [1], [0, 0, 1, 1], [], []>} : vector<16x32xbf16>, vector<32x32xbf16>, vector<16x32xf32> -> vector<16x32xf32>
      %261 = arith.addf %255, %260 : vector<16x32xf32>
      %262 = vector.extract_strided_slice %254 {offsets = [0, 1, 0], sizes = [1, 16, 32], strides = [1, 1, 1]} : vector<1x18x32xbf16> to vector<1x16x32xbf16>
      %263 = vector.shape_cast %262 : vector<1x16x32xbf16> to vector<16x32xbf16>
      %264 = vector.extract_strided_slice %250 {offsets = [1, 0, 0], sizes = [1, 32, 32], strides = [1, 1, 1]} : vector<3x32x32xbf16> to vector<1x32x32xbf16>
      %265 = vector.shape_cast %264 : vector<1x32x32xbf16> to vector<32x32xbf16>
      %cst_98 = arith.constant dense<0.000000e+00> : vector<16x32xf32>
      %266 = tpu.matmul %263, %265, %cst_98 {dimension_numbers = #tpu.dot_dimension_numbers<[1], [0], [0], [1], [0, 0, 1, 1], [], []>} : vector<16x32xbf16>, vector<32x32xbf16>, vector<16x32xf32> -> vector<16x32xf32>
      %267 = arith.addf %261, %266 : vector<16x32xf32>
      %268 = vector.extract_strided_slice %254 {offsets = [0, 2, 0], sizes = [1, 16, 32], strides = [1, 1, 1]} : vector<1x18x32xbf16> to vector<1x16x32xbf16>
      %269 = vector.shape_cast %268 : vector<1x16x32xbf16> to vector<16x32xbf16>
      %270 = vector.extract_strided_slice %250 {offsets = [2, 0, 0], sizes = [1, 32, 32], strides = [1, 1, 1]} : vector<3x32x32xbf16> to vector<1x32x32xbf16>
      %271 = vector.shape_cast %270 : vector<1x32x32xbf16> to vector<32x32xbf16>
      %cst_99 = arith.constant dense<0.000000e+00> : vector<16x32xf32>
      %272 = tpu.matmul %269, %271, %cst_99 {dimension_numbers = #tpu.dot_dimension_numbers<[1], [0], [0], [1], [0, 0, 1, 1], [], []>} : vector<16x32xbf16>, vector<32x32xbf16>, vector<16x32xf32> -> vector<16x32xf32>
      %273 = arith.addf %267, %272 : vector<16x32xf32>
      %274 = vector.shape_cast %273 : vector<16x32xf32> to vector<1x16x32xf32>
      %275 = vector.shape_cast %251 : vector<1x32xf32> to vector<1x1x32xf32>
      %276 = vector.broadcast %275 : vector<1x1x32xf32> to vector<1x16x32xf32>
      %277 = arith.addf %274, %276 : vector<1x16x32xf32>
      %cst_100 = arith.constant 0.000000e+00 : f32
      %278 = vector.broadcast %cst_100 : f32 to vector<1x16x32xf32>
      %279 = arith.maximumf %277, %278 : vector<1x16x32xf32>
      %280 = math.absf %277 : vector<1x16x32xf32>
      %cst_101 = arith.constant 0.000000e+00 : f32
      %281 = vector.broadcast %cst_101 : f32 to vector<1x16x32xf32>
      %282 = arith.subf %281, %280 : vector<1x16x32xf32>
      %283 = math.exp %282 : vector<1x16x32xf32>
      %cst_102 = arith.constant 1.000000e+00 : f32
      %284 = vector.broadcast %cst_102 : f32 to vector<1x16x32xf32>
      %285 = arith.addf %284, %283 : vector<1x16x32xf32>
      %286 = math.log %285 : vector<1x16x32xf32>
      %287 = arith.addf %279, %286 : vector<1x16x32xf32>
      %288 = math.tanh %287 : vector<1x16x32xf32>
      %289 = arith.mulf %277, %288 : vector<1x16x32xf32>
      %290 = vector.shape_cast %289 : vector<1x16x32xf32> to vector<16x32xf32>
      %291 = arith.truncf %290 : vector<16x32xf32> to vector<16x32xbf16>
      %c0_103 = arith.constant 0 : index
      %c0_104 = arith.constant 0 : index
      %292 = vector.load %arg10[%c0_103, %c0_104] : memref<32x32xbf16, #tpu.memory_space<vmem>>, vector<32x32xbf16>
      %cst_105 = arith.constant dense<0.000000e+00> : vector<16x32xf32>
      %293 = tpu.matmul %291, %292, %cst_105 {dimension_numbers = #tpu.dot_dimension_numbers<[1], [0], [0], [1], [0, 0, 1, 1], [], []>} : vector<16x32xbf16>, vector<32x32xbf16>, vector<16x32xf32> -> vector<16x32xf32>
      %294 = vector.shape_cast %293 : vector<16x32xf32> to vector<1x16x32xf32>
      %295 = vector.broadcast %0 : vector<1x16x1xf32> to vector<1x16x32xf32>
      %296 = arith.mulf %294, %295 : vector<1x16x32xf32>
      %297 = arith.addf %209, %296 : vector<1x16x32xf32>
      %c0_106 = arith.constant 0 : index
      %c0_107 = arith.constant 0 : index
      %298 = vector.load %arg3[%c0_106, %c0_107] : memref<16x32xf32, #tpu.memory_space<vmem>>, vector<16x32xf32>
      %299 = vector.shape_cast %298 : vector<16x32xf32> to vector<1x16x32xf32>
      %300 = arith.addf %297, %299 : vector<1x16x32xf32>
      %c0_108 = arith.constant 0 : index
      %c0_109 = arith.constant 0 : index
      %c0_110 = arith.constant 0 : index
      %301 = vector.load %arg19[%c0_108, %c0_109, %c0_110] : memref<1x16x32xf32, #tpu.memory_space<vmem>>, vector<1x16x32xf32>
      tpu.vector_store %arg19[%c0_108, %c0_109, %c0_110], %300 {strides = array<i32>} : memref<1x16x32xf32, #tpu.memory_space<vmem>>, vector<1x16x32xf32>,
    } else {
    }
    %c0_6 = arith.constant 0 : index
    %c0_7 = arith.constant 0 : index
    %c0_8 = arith.constant 0 : index
    %5 = vector.load %arg19[%c0_6, %c0_7, %c0_8] : memref<1x16x32xf32, #tpu.memory_space<vmem>>, vector<1x16x32xf32>
    %6 = vector.shape_cast %5 : vector<1x16x32xf32> to vector<16x32xf32>
    %7 = arith.truncf %6 : vector<16x32xf32> to vector<16x32xbf16>
    %c0_9 = arith.constant 0 : index
    %c0_10 = arith.constant 0 : index
    %c0_11 = arith.constant 0 : index
    %c0_12 = arith.constant 0 : index
    %8 = vector.load %arg13[%c0_9, %c0_10, %c0_11, %c0_12] : memref<1x1x1x64xf32, #tpu.memory_space<vmem>>, vector<1x1x1x64xf32>
    %9 = vector.shape_cast %8 : vector<1x1x1x64xf32> to vector<1x64xf32>
    %c0_13 = arith.constant 0 : index
    %c0_14 = arith.constant 0 : index
    %c0_15 = arith.constant 0 : index
    %c0_16 = arith.constant 0 : index
    %10 = vector.load %arg14[%c0_13, %c0_14, %c0_15, %c0_16] : memref<1x1x1x64xf32, #tpu.memory_space<vmem>>, vector<1x1x1x64xf32>
    %11 = vector.shape_cast %10 : vector<1x1x1x64xf32> to vector<1x64xf32>
    %c0_17 = arith.constant 0 : index
    %c0_18 = arith.constant 0 : index
    %c0_19 = arith.constant 0 : index
    %12 = vector.load %arg11[%c0_17, %c0_18, %c0_19] : memref<1x32x96xbf16, #tpu.memory_space<vmem>>, vector<1x32x96xbf16>
    %13 = vector.shape_cast %12 : vector<1x32x96xbf16> to vector<32x96xbf16>
    %cst = arith.constant dense<0.000000e+00> : vector<16x96xf32>
    %14 = tpu.matmul %7, %13, %cst {dimension_numbers = #tpu.dot_dimension_numbers<[1], [0], [0], [1], [0, 0, 1, 1], [], []>} : vector<16x32xbf16>, vector<32x96xbf16>, vector<16x96xf32> -> vector<16x96xf32>
    %15 = vector.extract_strided_slice %14 {offsets = [0, 0], sizes = [16, 16], strides = [1, 1]} : vector<16x96xf32> to vector<16x16xf32>
    %16 = vector.shape_cast %15 : vector<16x16xf32> to vector<1x16x16xf32>
    %17 = arith.truncf %16 : vector<1x16x16xf32> to vector<1x16x16xbf16>
    %18 = vector.extract_strided_slice %14 {offsets = [0, 32], sizes = [16, 16], strides = [1, 1]} : vector<16x96xf32> to vector<16x16xf32>
    %19 = vector.shape_cast %18 : vector<16x16xf32> to vector<1x16x16xf32>
    %20 = arith.truncf %19 : vector<1x16x16xf32> to vector<1x16x16xbf16>
    %21 = vector.extract_strided_slice %14 {offsets = [0, 64], sizes = [16, 16], strides = [1, 1]} : vector<16x96xf32> to vector<16x16xf32>
    %22 = vector.shape_cast %21 : vector<16x16xf32> to vector<1x16x16xf32>
    %23 = arith.truncf %22 : vector<1x16x16xf32> to vector<1x16x16xbf16>
    "tpu.trace_start"() <{level = 10 : i32, message = "bqd,bkd->bqk"}> : () -> ()
    %cst_20 = arith.constant dense<0.000000e+00> : vector<1x16x16xf32>
    %24 = tpu.matmul %17, %20, %cst_20 {dimension_numbers = #tpu.dot_dimension_numbers<[2], [2], [1], [1], [0, 0, 0, 1, 1, 1], [0], [0]>} : vector<1x16x16xbf16>, vector<1x16x16xbf16>, vector<1x16x16xf32> -> vector<1x16x16xf32>
    "tpu.trace_stop"() : () -> ()
    %cst_21 = arith.constant 2.500000e-01 : f32
    %25 = vector.broadcast %cst_21 : f32 to vector<1x16x16xf32>
    %26 = arith.mulf %24, %25 : vector<1x16x16xf32>
    %27 = vector.broadcast %1 : vector<1x1x16xf32> to vector<1x16x16xf32>
    %28 = arith.addf %26, %27 : vector<1x16x16xf32>
    %cst_22 = arith.constant dense<0xFF800000> : vector<1x16xf32>
    %29 = vector.multi_reduction <maximumf>, %28, %cst_22 [2] : vector<1x16x16xf32> to vector<1x16xf32>
    %30 = vector.shape_cast %29 : vector<1x16xf32> to vector<1x16x1xf32>
    %31 = vector.broadcast %30 : vector<1x16x1xf32> to vector<1x16x16xf32>
    %32 = arith.subf %28, %31 : vector<1x16x16xf32>
    %33 = math.exp %32 : vector<1x16x16xf32>
    %cst_23 = arith.constant dense<0.000000e+00> : vector<1x16xf32>
    %34 = vector.multi_reduction <add>, %33, %cst_23 [2] : vector<1x16x16xf32> to vector<1x16xf32>
    %35 = vector.shape_cast %34 : vector<1x16xf32> to vector<1x16x1xf32>
    %36 = tpu.reciprocal %35 {approx = true} : vector<1x16x1xf32> -> vector<1x16x1xf32>
    %37 = vector.broadcast %36 : vector<1x16x1xf32> to vector<1x16x16xf32>
    %38 = arith.mulf %33, %37 : vector<1x16x16xf32>
    %39 = arith.truncf %38 : vector<1x16x16xf32> to vector<1x16x16xbf16>
    "tpu.trace_start"() <{level = 10 : i32, message = "bqk,bkd->bqd"}> : () -> ()
    %cst_24 = arith.constant dense<0.000000e+00> : vector<1x16x16xf32>
    %40 = tpu.matmul %39, %23, %cst_24 {dimension_numbers = #tpu.dot_dimension_numbers<[2], [1], [1], [2], [0, 0, 0, 1, 1, 2], [0], [0]>} : vector<1x16x16xbf16>, vector<1x16x16xbf16>, vector<1x16x16xf32> -> vector<1x16x16xf32>
    "tpu.trace_stop"() : () -> ()
    %41 = vector.extract_strided_slice %14 {offsets = [0, 16], sizes = [16, 16], strides = [1, 1]} : vector<16x96xf32> to vector<16x16xf32>
    %42 = vector.shape_cast %41 : vector<16x16xf32> to vector<1x16x16xf32>
    %43 = arith.truncf %42 : vector<1x16x16xf32> to vector<1x16x16xbf16>
    %44 = vector.extract_strided_slice %14 {offsets = [0, 48], sizes = [16, 16], strides = [1, 1]} : vector<16x96xf32> to vector<16x16xf32>
    %45 = vector.shape_cast %44 : vector<16x16xf32> to vector<1x16x16xf32>
    %46 = arith.truncf %45 : vector<1x16x16xf32> to vector<1x16x16xbf16>
    %47 = vector.extract_strided_slice %14 {offsets = [0, 80], sizes = [16, 16], strides = [1, 1]} : vector<16x96xf32> to vector<16x16xf32>
    %48 = vector.shape_cast %47 : vector<16x16xf32> to vector<1x16x16xf32>
    %49 = arith.truncf %48 : vector<1x16x16xf32> to vector<1x16x16xbf16>
    "tpu.trace_start"() <{level = 10 : i32, message = "bqd,bkd->bqk"}> : () -> ()
    %cst_25 = arith.constant dense<0.000000e+00> : vector<1x16x16xf32>
    %50 = tpu.matmul %43, %46, %cst_25 {dimension_numbers = #tpu.dot_dimension_numbers<[2], [2], [1], [1], [0, 0, 0, 1, 1, 1], [0], [0]>} : vector<1x16x16xbf16>, vector<1x16x16xbf16>, vector<1x16x16xf32> -> vector<1x16x16xf32>
    "tpu.trace_stop"() : () -> ()
    %cst_26 = arith.constant 2.500000e-01 : f32
    %51 = vector.broadcast %cst_26 : f32 to vector<1x16x16xf32>
    %52 = arith.mulf %50, %51 : vector<1x16x16xf32>
    %53 = vector.broadcast %1 : vector<1x1x16xf32> to vector<1x16x16xf32>
    %54 = arith.addf %52, %53 : vector<1x16x16xf32>
    %cst_27 = arith.constant dense<0xFF800000> : vector<1x16xf32>
    %55 = vector.multi_reduction <maximumf>, %54, %cst_27 [2] : vector<1x16x16xf32> to vector<1x16xf32>
    %56 = vector.shape_cast %55 : vector<1x16xf32> to vector<1x16x1xf32>
    %57 = vector.broadcast %56 : vector<1x16x1xf32> to vector<1x16x16xf32>
    %58 = arith.subf %54, %57 : vector<1x16x16xf32>
    %59 = math.exp %58 : vector<1x16x16xf32>
    %cst_28 = arith.constant dense<0.000000e+00> : vector<1x16xf32>
    %60 = vector.multi_reduction <add>, %59, %cst_28 [2] : vector<1x16x16xf32> to vector<1x16xf32>
    %61 = vector.shape_cast %60 : vector<1x16xf32> to vector<1x16x1xf32>
    %62 = tpu.reciprocal %61 {approx = true} : vector<1x16x1xf32> -> vector<1x16x1xf32>
    %63 = vector.broadcast %62 : vector<1x16x1xf32> to vector<1x16x16xf32>
    %64 = arith.mulf %59, %63 : vector<1x16x16xf32>
    %65 = arith.truncf %64 : vector<1x16x16xf32> to vector<1x16x16xbf16>
    "tpu.trace_start"() <{level = 10 : i32, message = "bqk,bkd->bqd"}> : () -> ()
    %cst_29 = arith.constant dense<0.000000e+00> : vector<1x16x16xf32>
    %66 = tpu.matmul %65, %49, %cst_29 {dimension_numbers = #tpu.dot_dimension_numbers<[2], [1], [1], [2], [0, 0, 0, 1, 1, 2], [0], [0]>} : vector<1x16x16xbf16>, vector<1x16x16xbf16>, vector<1x16x16xf32> -> vector<1x16x16xf32>
    "tpu.trace_stop"() : () -> ()
    %67 = tpu.concatenate %40, %66 in 2 : vector<1x16x16xf32>, vector<1x16x16xf32> -> vector<1x16x32xf32>
    %68 = vector.shape_cast %67 : vector<1x16x32xf32> to vector<16x32xf32>
    %69 = arith.truncf %68 : vector<16x32xf32> to vector<16x32xbf16>
    %c0_30 = arith.constant 0 : index
    %c0_31 = arith.constant 0 : index
    %c0_32 = arith.constant 0 : index
    %70 = vector.load %arg12[%c0_30, %c0_31, %c0_32] : memref<1x32x32xbf16, #tpu.memory_space<vmem>>, vector<1x32x32xbf16>
    %71 = vector.shape_cast %70 : vector<1x32x32xbf16> to vector<32x32xbf16>
    %cst_33 = arith.constant dense<0.000000e+00> : vector<16x32xf32>
    %72 = tpu.matmul %69, %71, %cst_33 {dimension_numbers = #tpu.dot_dimension_numbers<[1], [0], [0], [1], [0, 0, 1, 1], [], []>} : vector<16x32xbf16>, vector<32x32xbf16>, vector<16x32xf32> -> vector<16x32xf32>
    %73 = arith.addf %6, %72 : vector<16x32xf32>
    %74 = vector.shape_cast %73 : vector<16x32xf32> to vector<1x16x32xf32>
    %cst_34 = arith.constant dense<0.000000e+00> : vector<1x16xf32>
    %75 = vector.multi_reduction <add>, %74, %cst_34 [2] : vector<1x16x32xf32> to vector<1x16xf32>
    %76 = vector.shape_cast %75 : vector<1x16xf32> to vector<1x16x1xf32>
    %cst_35 = arith.constant 3.200000e+01 : f32
    %77 = vector.broadcast %cst_35 : f32 to vector<1x16x1xf32>
    %78 = arith.divf %76, %77 : vector<1x16x1xf32>
    %79 = vector.broadcast %78 : vector<1x16x1xf32> to vector<1x16x32xf32>
    %80 = arith.subf %74, %79 : vector<1x16x32xf32>
    %81 = arith.mulf %80, %80 : vector<1x16x32xf32>
    %cst_36 = arith.constant dense<0.000000e+00> : vector<1x16xf32>
    %82 = vector.multi_reduction <add>, %81, %cst_36 [2] : vector<1x16x32xf32> to vector<1x16xf32>
    %83 = vector.shape_cast %82 : vector<1x16xf32> to vector<1x16x1xf32>
    %cst_37 = arith.constant 0.0322580636 : f32
    %84 = vector.broadcast %cst_37 : f32 to vector<1x16x1xf32>
    %85 = arith.mulf %83, %84 : vector<1x16x1xf32>
    %cst_38 = arith.constant 9.99999996E-13 : f32
    %86 = vector.broadcast %cst_38 : f32 to vector<1x16x1xf32>
    %87 = arith.addf %85, %86 : vector<1x16x1xf32>
    %88 = math.rsqrt %87 : vector<1x16x1xf32>
    %89 = vector.broadcast %88 : vector<1x16x1xf32> to vector<1x16x32xf32>
    %90 = arith.mulf %80, %89 : vector<1x16x32xf32>
    %91 = vector.extract_strided_slice %9 {offsets = [0, 0], sizes = [1, 32], strides = [1, 1]} : vector<1x64xf32> to vector<1x32xf32>
    %92 = vector.shape_cast %91 : vector<1x32xf32> to vector<1x1x32xf32>
    %93 = vector.extract_strided_slice %9 {offsets = [0, 32], sizes = [1, 32], strides = [1, 1]} : vector<1x64xf32> to vector<1x32xf32>
    %94 = vector.shape_cast %93 : vector<1x32xf32> to vector<1x1x32xf32>
    %95 = vector.broadcast %94 : vector<1x1x32xf32> to vector<1x16x32xf32>
    %96 = arith.mulf %95, %90 : vector<1x16x32xf32>
    %97 = vector.broadcast %92 : vector<1x1x32xf32> to vector<1x16x32xf32>
    %98 = arith.addf %96, %97 : vector<1x16x32xf32>
    %99 = vector.broadcast %0 : vector<1x16x1xf32> to vector<1x16x32xf32>
    %100 = arith.mulf %98, %99 : vector<1x16x32xf32>
    %c0_39 = arith.constant 0 : index
    %c0_40 = arith.constant 0 : index
    %c0_41 = arith.constant 0 : index
    %c0_42 = arith.constant 0 : index
    %101 = vector.load %arg15[%c0_39, %c0_40, %c0_41, %c0_42] : memref<1x9x32x64xbf16, #tpu.memory_space<vmem>>, vector<1x9x32x64xbf16>
    %102 = vector.shape_cast %101 : vector<1x9x32x64xbf16> to vector<9x32x64xbf16>
    %c0_43 = arith.constant 0 : index
    %c0_44 = arith.constant 0 : index
    %c0_45 = arith.constant 0 : index
    %103 = vector.load %arg16[%c0_43, %c0_44, %c0_45] : memref<1x1x64xf32, #tpu.memory_space<vmem>>, vector<1x1x64xf32>
    %104 = vector.shape_cast %103 : vector<1x1x64xf32> to vector<1x64xf32>
    %105 = arith.truncf %100 : vector<1x16x32xf32> to vector<1x16x32xbf16>
    %cst_46 = arith.constant 0.000000e+00 : bf16
    %106 = vector.broadcast %cst_46 : bf16 to vector<1x4x32xbf16>
    %107 = tpu.concatenate %106, %105, %106 in 1 : vector<1x4x32xbf16>, vector<1x16x32xbf16>, vector<1x4x32xbf16> -> vector<1x24x32xbf16>
    %cst_47 = arith.constant 0.000000e+00 : f32
    %108 = vector.broadcast %cst_47 : f32 to vector<16x64xf32>
    %109 = vector.extract_strided_slice %107 {offsets = [0, 0, 0], sizes = [1, 16, 32], strides = [1, 1, 1]} : vector<1x24x32xbf16> to vector<1x16x32xbf16>
    %110 = vector.shape_cast %109 : vector<1x16x32xbf16> to vector<16x32xbf16>
    %111 = vector.extract_strided_slice %102 {offsets = [0, 0, 0], sizes = [1, 32, 64], strides = [1, 1, 1]} : vector<9x32x64xbf16> to vector<1x32x64xbf16>
    %112 = vector.shape_cast %111 : vector<1x32x64xbf16> to vector<32x64xbf16>
    %cst_48 = arith.constant dense<0.000000e+00> : vector<16x64xf32>
    %113 = tpu.matmul %110, %112, %cst_48 {dimension_numbers = #tpu.dot_dimension_numbers<[1], [0], [0], [1], [0, 0, 1, 1], [], []>} : vector<16x32xbf16>, vector<32x64xbf16>, vector<16x64xf32> -> vector<16x64xf32>
    %114 = arith.addf %108, %113 : vector<16x64xf32>
    %115 = vector.extract_strided_slice %107 {offsets = [0, 1, 0], sizes = [1, 16, 32], strides = [1, 1, 1]} : vector<1x24x32xbf16> to vector<1x16x32xbf16>
    %116 = vector.shape_cast %115 : vector<1x16x32xbf16> to vector<16x32xbf16>
    %117 = vector.extract_strided_slice %102 {offsets = [1, 0, 0], sizes = [1, 32, 64], strides = [1, 1, 1]} : vector<9x32x64xbf16> to vector<1x32x64xbf16>
    %118 = vector.shape_cast %117 : vector<1x32x64xbf16> to vector<32x64xbf16>
    %cst_49 = arith.constant dense<0.000000e+00> : vector<16x64xf32>
    %119 = tpu.matmul %116, %118, %cst_49 {dimension_numbers = #tpu.dot_dimension_numbers<[1], [0], [0], [1], [0, 0, 1, 1], [], []>} : vector<16x32xbf16>, vector<32x64xbf16>, vector<16x64xf32> -> vector<16x64xf32>
    %120 = arith.addf %114, %119 : vector<16x64xf32>
    %121 = vector.extract_strided_slice %107 {offsets = [0, 2, 0], sizes = [1, 16, 32], strides = [1, 1, 1]} : vector<1x24x32xbf16> to vector<1x16x32xbf16>
    %122 = vector.shape_cast %121 : vector<1x16x32xbf16> to vector<16x32xbf16>
    %123 = vector.extract_strided_slice %102 {offsets = [2, 0, 0], sizes = [1, 32, 64], strides = [1, 1, 1]} : vector<9x32x64xbf16> to vector<1x32x64xbf16>
    %124 = vector.shape_cast %123 : vector<1x32x64xbf16> to vector<32x64xbf16>
    %cst_50 = arith.constant dense<0.000000e+00> : vector<16x64xf32>
    %125 = tpu.matmul %122, %124, %cst_50 {dimension_numbers = #tpu.dot_dimension_numbers<[1], [0], [0], [1], [0, 0, 1, 1], [], []>} : vector<16x32xbf16>, vector<32x64xbf16>, vector<16x64xf32> -> vector<16x64xf32>
    %126 = arith.addf %120, %125 : vector<16x64xf32>
    %127 = vector.extract_strided_slice %107 {offsets = [0, 3, 0], sizes = [1, 16, 32], strides = [1, 1, 1]} : vector<1x24x32xbf16> to vector<1x16x32xbf16>
    %128 = vector.shape_cast %127 : vector<1x16x32xbf16> to vector<16x32xbf16>
    %129 = vector.extract_strided_slice %102 {offsets = [3, 0, 0], sizes = [1, 32, 64], strides = [1, 1, 1]} : vector<9x32x64xbf16> to vector<1x32x64xbf16>
    %130 = vector.shape_cast %129 : vector<1x32x64xbf16> to vector<32x64xbf16>
    %cst_51 = arith.constant dense<0.000000e+00> : vector<16x64xf32>
    %131 = tpu.matmul %128, %130, %cst_51 {dimension_numbers = #tpu.dot_dimension_numbers<[1], [0], [0], [1], [0, 0, 1, 1], [], []>} : vector<16x32xbf16>, vector<32x64xbf16>, vector<16x64xf32> -> vector<16x64xf32>
    %132 = arith.addf %126, %131 : vector<16x64xf32>
    %133 = vector.extract_strided_slice %107 {offsets = [0, 4, 0], sizes = [1, 16, 32], strides = [1, 1, 1]} : vector<1x24x32xbf16> to vector<1x16x32xbf16>
    %134 = vector.shape_cast %133 : vector<1x16x32xbf16> to vector<16x32xbf16>
    %135 = vector.extract_strided_slice %102 {offsets = [4, 0, 0], sizes = [1, 32, 64], strides = [1, 1, 1]} : vector<9x32x64xbf16> to vector<1x32x64xbf16>
    %136 = vector.shape_cast %135 : vector<1x32x64xbf16> to vector<32x64xbf16>
    %cst_52 = arith.constant dense<0.000000e+00> : vector<16x64xf32>
    %137 = tpu.matmul %134, %136, %cst_52 {dimension_numbers = #tpu.dot_dimension_numbers<[1], [0], [0], [1], [0, 0, 1, 1], [], []>} : vector<16x32xbf16>, vector<32x64xbf16>, vector<16x64xf32> -> vector<16x64xf32>
    %138 = arith.addf %132, %137 : vector<16x64xf32>
    %139 = vector.extract_strided_slice %107 {offsets = [0, 5, 0], sizes = [1, 16, 32], strides = [1, 1, 1]} : vector<1x24x32xbf16> to vector<1x16x32xbf16>
    %140 = vector.shape_cast %139 : vector<1x16x32xbf16> to vector<16x32xbf16>
    %141 = vector.extract_strided_slice %102 {offsets = [5, 0, 0], sizes = [1, 32, 64], strides = [1, 1, 1]} : vector<9x32x64xbf16> to vector<1x32x64xbf16>
    %142 = vector.shape_cast %141 : vector<1x32x64xbf16> to vector<32x64xbf16>
    %cst_53 = arith.constant dense<0.000000e+00> : vector<16x64xf32>
    %143 = tpu.matmul %140, %142, %cst_53 {dimension_numbers = #tpu.dot_dimension_numbers<[1], [0], [0], [1], [0, 0, 1, 1], [], []>} : vector<16x32xbf16>, vector<32x64xbf16>, vector<16x64xf32> -> vector<16x64xf32>
    %144 = arith.addf %138, %143 : vector<16x64xf32>
    %145 = vector.extract_strided_slice %107 {offsets = [0, 6, 0], sizes = [1, 16, 32], strides = [1, 1, 1]} : vector<1x24x32xbf16> to vector<1x16x32xbf16>
    %146 = vector.shape_cast %145 : vector<1x16x32xbf16> to vector<16x32xbf16>
    %147 = vector.extract_strided_slice %102 {offsets = [6, 0, 0], sizes = [1, 32, 64], strides = [1, 1, 1]} : vector<9x32x64xbf16> to vector<1x32x64xbf16>
    %148 = vector.shape_cast %147 : vector<1x32x64xbf16> to vector<32x64xbf16>
    %cst_54 = arith.constant dense<0.000000e+00> : vector<16x64xf32>
    %149 = tpu.matmul %146, %148, %cst_54 {dimension_numbers = #tpu.dot_dimension_numbers<[1], [0], [0], [1], [0, 0, 1, 1], [], []>} : vector<16x32xbf16>, vector<32x64xbf16>, vector<16x64xf32> -> vector<16x64xf32>
    %150 = arith.addf %144, %149 : vector<16x64xf32>
    %151 = vector.extract_strided_slice %107 {offsets = [0, 7, 0], sizes = [1, 16, 32], strides = [1, 1, 1]} : vector<1x24x32xbf16> to vector<1x16x32xbf16>
    %152 = vector.shape_cast %151 : vector<1x16x32xbf16> to vector<16x32xbf16>
    %153 = vector.extract_strided_slice %102 {offsets = [7, 0, 0], sizes = [1, 32, 64], strides = [1, 1, 1]} : vector<9x32x64xbf16> to vector<1x32x64xbf16>
    %154 = vector.shape_cast %153 : vector<1x32x64xbf16> to vector<32x64xbf16>
    %cst_55 = arith.constant dense<0.000000e+00> : vector<16x64xf32>
    %155 = tpu.matmul %152, %154, %cst_55 {dimension_numbers = #tpu.dot_dimension_numbers<[1], [0], [0], [1], [0, 0, 1, 1], [], []>} : vector<16x32xbf16>, vector<32x64xbf16>, vector<16x64xf32> -> vector<16x64xf32>
    %156 = arith.addf %150, %155 : vector<16x64xf32>
    %157 = vector.extract_strided_slice %107 {offsets = [0, 8, 0], sizes = [1, 16, 32], strides = [1, 1, 1]} : vector<1x24x32xbf16> to vector<1x16x32xbf16>
    %158 = vector.shape_cast %157 : vector<1x16x32xbf16> to vector<16x32xbf16>
    %159 = vector.extract_strided_slice %102 {offsets = [8, 0, 0], sizes = [1, 32, 64], strides = [1, 1, 1]} : vector<9x32x64xbf16> to vector<1x32x64xbf16>
    %160 = vector.shape_cast %159 : vector<1x32x64xbf16> to vector<32x64xbf16>
    %cst_56 = arith.constant dense<0.000000e+00> : vector<16x64xf32>
    %161 = tpu.matmul %158, %160, %cst_56 {dimension_numbers = #tpu.dot_dimension_numbers<[1], [0], [0], [1], [0, 0, 1, 1], [], []>} : vector<16x32xbf16>, vector<32x64xbf16>, vector<16x64xf32> -> vector<16x64xf32>
    %162 = arith.addf %156, %161 : vector<16x64xf32>
    %163 = vector.shape_cast %162 : vector<16x64xf32> to vector<1x16x64xf32>
    %164 = vector.shape_cast %104 : vector<1x64xf32> to vector<1x1x64xf32>
    %165 = vector.broadcast %164 : vector<1x1x64xf32> to vector<1x16x64xf32>
    %166 = arith.addf %163, %165 : vector<1x16x64xf32>
    %cst_57 = arith.constant 0.000000e+00 : f32
    %167 = vector.broadcast %cst_57 : f32 to vector<1x16x64xf32>
    %168 = arith.maximumf %166, %167 : vector<1x16x64xf32>
    %c0_58 = arith.constant 0 : index
    %c0_59 = arith.constant 0 : index
    %c0_60 = arith.constant 0 : index
    %c0_61 = arith.constant 0 : index
    %169 = vector.load %arg17[%c0_58, %c0_59, %c0_60, %c0_61] : memref<1x1x64x32xbf16, #tpu.memory_space<vmem>>, vector<1x1x64x32xbf16>
    %170 = vector.shape_cast %169 : vector<1x1x64x32xbf16> to vector<1x64x32xbf16>
    %c0_62 = arith.constant 0 : index
    %c0_63 = arith.constant 0 : index
    %c0_64 = arith.constant 0 : index
    %171 = vector.load %arg18[%c0_62, %c0_63, %c0_64] : memref<1x1x32xf32, #tpu.memory_space<vmem>>, vector<1x1x32xf32>
    %172 = vector.shape_cast %171 : vector<1x1x32xf32> to vector<1x32xf32>
    %173 = arith.truncf %168 : vector<1x16x64xf32> to vector<1x16x64xbf16>
    %174 = vector.shape_cast %173 : vector<1x16x64xbf16> to vector<16x64xbf16>
    %175 = vector.shape_cast %170 : vector<1x64x32xbf16> to vector<64x32xbf16>
    %cst_65 = arith.constant dense<0.000000e+00> : vector<16x32xf32>
    %176 = tpu.matmul %174, %175, %cst_65 {dimension_numbers = #tpu.dot_dimension_numbers<[1], [0], [0], [1], [0, 0, 1, 1], [], []>} : vector<16x64xbf16>, vector<64x32xbf16>, vector<16x32xf32> -> vector<16x32xf32>
    %177 = vector.shape_cast %176 : vector<16x32xf32> to vector<1x16x32xf32>
    %178 = vector.shape_cast %172 : vector<1x32xf32> to vector<1x1x32xf32>
    %179 = vector.broadcast %178 : vector<1x1x32xf32> to vector<1x16x32xf32>
    %180 = arith.addf %177, %179 : vector<1x16x32xf32>
    %181 = arith.addf %180, %100 : vector<1x16x32xf32>
    %cst_66 = arith.constant dense<0.000000e+00> : vector<1x16xf32>
    %182 = vector.multi_reduction <add>, %181, %cst_66 [2] : vector<1x16x32xf32> to vector<1x16xf32>
    %183 = vector.shape_cast %182 : vector<1x16xf32> to vector<1x16x1xf32>
    %cst_67 = arith.constant 3.200000e+01 : f32
    %184 = vector.broadcast %cst_67 : f32 to vector<1x16x1xf32>
    %185 = arith.divf %183, %184 : vector<1x16x1xf32>
    %186 = vector.broadcast %185 : vector<1x16x1xf32> to vector<1x16x32xf32>
    %187 = arith.subf %181, %186 : vector<1x16x32xf32>
    %188 = arith.mulf %187, %187 : vector<1x16x32xf32>
    %cst_68 = arith.constant dense<0.000000e+00> : vector<1x16xf32>
    %189 = vector.multi_reduction <add>, %188, %cst_68 [2] : vector<1x16x32xf32> to vector<1x16xf32>
    %190 = vector.shape_cast %189 : vector<1x16xf32> to vector<1x16x1xf32>
    %cst_69 = arith.constant 0.0322580636 : f32
    %191 = vector.broadcast %cst_69 : f32 to vector<1x16x1xf32>
    %192 = arith.mulf %190, %191 : vector<1x16x1xf32>
    %cst_70 = arith.constant 9.99999996E-13 : f32
    %193 = vector.broadcast %cst_70 : f32 to vector<1x16x1xf32>
    %194 = arith.addf %192, %193 : vector<1x16x1xf32>
    %195 = math.rsqrt %194 : vector<1x16x1xf32>
    %196 = vector.broadcast %195 : vector<1x16x1xf32> to vector<1x16x32xf32>
    %197 = arith.mulf %187, %196 : vector<1x16x32xf32>
    %198 = vector.extract_strided_slice %11 {offsets = [0, 0], sizes = [1, 32], strides = [1, 1]} : vector<1x64xf32> to vector<1x32xf32>
    %199 = vector.shape_cast %198 : vector<1x32xf32> to vector<1x1x32xf32>
    %200 = vector.extract_strided_slice %11 {offsets = [0, 32], sizes = [1, 32], strides = [1, 1]} : vector<1x64xf32> to vector<1x32xf32>
    %201 = vector.shape_cast %200 : vector<1x32xf32> to vector<1x1x32xf32>
    %202 = vector.broadcast %201 : vector<1x1x32xf32> to vector<1x16x32xf32>
    %203 = arith.mulf %202, %197 : vector<1x16x32xf32>
    %204 = vector.broadcast %199 : vector<1x1x32xf32> to vector<1x16x32xf32>
    %205 = arith.addf %203, %204 : vector<1x16x32xf32>
    %206 = vector.broadcast %0 : vector<1x16x1xf32> to vector<1x16x32xf32>
    %207 = arith.mulf %205, %206 : vector<1x16x32xf32>
    %c0_71 = arith.constant 0 : index
    %c0_72 = arith.constant 0 : index
    %c0_73 = arith.constant 0 : index
    %208 = vector.load %arg19[%c0_71, %c0_72, %c0_73] : memref<1x16x32xf32, #tpu.memory_space<vmem>>, vector<1x16x32xf32>
    tpu.vector_store %arg19[%c0_71, %c0_72, %c0_73], %207 {strides = array<i32>} : memref<1x16x32xf32, #tpu.memory_space<vmem>>, vector<1x16x32xf32>,
    return
  }
  func.func @transform_0(%arg0: i32, %arg1: i32) -> (i32, i32, i32) {
    %c0_i32 = arith.constant 0 : i32
    %c0_i32_0 = arith.constant 0 : i32
    %c0_i32_1 = arith.constant 0 : i32
    return %arg0, %c0_i32, %c0_i32_0 : i32, i32, i32
  }
  func.func @transform_1(%arg0: i32, %arg1: i32) -> (i32, i32) {
    %c0_i32 = arith.constant 0 : i32
    %c0_i32_0 = arith.constant 0 : i32
    %c0_i32_1 = arith.constant 0 : i32
    return %c0_i32, %c0_i32_0 : i32, i32
  }
  func.func @transform_2(%arg0: i32, %arg1: i32) -> (i32, i32, i32) {
    %c0_i32 = arith.constant 0 : i32
    %c0_i32_0 = arith.constant 0 : i32
    %c0_i32_1 = arith.constant 0 : i32
    return %arg0, %c0_i32, %c0_i32_0 : i32, i32, i32
  }
  func.func @transform_3(%arg0: i32, %arg1: i32) -> (i32, i32, i32) {
    %c0_i32 = arith.constant 0 : i32
    %c0_i32_0 = arith.constant 0 : i32
    %c0_i32_1 = arith.constant 0 : i32
    return %arg0, %c0_i32, %c0_i32_0 : i32, i32, i32
  }
  func.func @transform_4(%arg0: i32, %arg1: i32) -> (i32, i32, i32) {
    %c0_i32 = arith.constant 0 : i32
    %c0_i32_0 = arith.constant 0 : i32
    %c0_i32_1 = arith.constant 0 : i32
    %c0_i32_2 = arith.constant 0 : i32
    return %c0_i32, %c0_i32_0, %c0_i32_1 : i32, i32, i32
  }
  func.func @transform_5(%arg0: i32, %arg1: i32) -> (i32, i32) {
    %c0_i32 = arith.constant 0 : i32
    %c0_i32_0 = arith.constant 0 : i32
    %c0_i32_1 = arith.constant 0 : i32
    return %c0_i32, %c0_i32_0 : i32, i32
  }
  func.func @transform_6(%arg0: i32, %arg1: i32) -> (i32, i32, i32) {
    %c0_i32 = arith.constant 0 : i32
    %c0_i32_0 = arith.constant 0 : i32
    %c0_i32_1 = arith.constant 0 : i32
    %c0_i32_2 = arith.constant 0 : i32
    return %c0_i32, %c0_i32_0, %c0_i32_1 : i32, i32, i32
  }
  func.func @transform_7(%arg0: i32, %arg1: i32) -> (i32, i32) {
    %c0_i32 = arith.constant 0 : i32
    %c0_i32_0 = arith.constant 0 : i32
    %c0_i32_1 = arith.constant 0 : i32
    return %c0_i32, %c0_i32_0 : i32, i32
  }
  func.func @transform_8(%arg0: i32, %arg1: i32) -> (i32, i32) {
    %c0_i32 = arith.constant 0 : i32
    %c0_i32_0 = arith.constant 0 : i32
    %c0_i32_1 = arith.constant 0 : i32
    return %c0_i32, %c0_i32_0 : i32, i32
  }
  func.func @transform_9(%arg0: i32, %arg1: i32) -> (i32, i32, i32) {
    %c0_i32 = arith.constant 0 : i32
    %c0_i32_0 = arith.constant 0 : i32
    %c0_i32_1 = arith.constant 0 : i32
    return %arg1, %c0_i32, %c0_i32_0 : i32, i32, i32
  }
  func.func @transform_10(%arg0: i32, %arg1: i32) -> (i32, i32, i32) {
    %c0_i32 = arith.constant 0 : i32
    %c0_i32_0 = arith.constant 0 : i32
    %c0_i32_1 = arith.constant 0 : i32
    return %arg1, %c0_i32, %c0_i32_0 : i32, i32, i32
  }
  func.func @transform_11(%arg0: i32, %arg1: i32) -> (i32, i32, i32, i32) {
    %c0_i32 = arith.constant 0 : i32
    %c0_i32_0 = arith.constant 0 : i32
    %c0_i32_1 = arith.constant 0 : i32
    return %arg1, %arg0, %c0_i32, %c0_i32_0 : i32, i32, i32, i32
  }
  func.func @transform_12(%arg0: i32, %arg1: i32) -> (i32, i32, i32, i32) {
    %c0_i32 = arith.constant 0 : i32
    %c0_i32_0 = arith.constant 0 : i32
    %c0_i32_1 = arith.constant 0 : i32
    return %arg1, %arg0, %c0_i32, %c0_i32_0 : i32, i32, i32, i32
  }
  func.func @transform_13(%arg0: i32, %arg1: i32) -> (i32, i32, i32, i32) {
    %c0_i32 = arith.constant 0 : i32
    %c0_i32_0 = arith.constant 0 : i32
    %c0_i32_1 = arith.constant 0 : i32
    %c0_i32_2 = arith.constant 0 : i32
    return %arg1, %c0_i32, %c0_i32_0, %c0_i32_1 : i32, i32, i32, i32
  }
  func.func @transform_14(%arg0: i32, %arg1: i32) -> (i32, i32, i32) {
    %c0_i32 = arith.constant 0 : i32
    %c0_i32_0 = arith.constant 0 : i32
    %c0_i32_1 = arith.constant 0 : i32
    return %arg1, %c0_i32, %c0_i32_0 : i32, i32, i32
  }
  func.func @transform_15(%arg0: i32, %arg1: i32) -> (i32, i32, i32, i32) {
    %c0_i32 = arith.constant 0 : i32
    %c0_i32_0 = arith.constant 0 : i32
    %c0_i32_1 = arith.constant 0 : i32
    %c0_i32_2 = arith.constant 0 : i32
    return %arg1, %c0_i32, %c0_i32_0, %c0_i32_1 : i32, i32, i32, i32
  }
  func.func @transform_16(%arg0: i32, %arg1: i32) -> (i32, i32, i32) {
    %c0_i32 = arith.constant 0 : i32
    %c0_i32_0 = arith.constant 0 : i32
    %c0_i32_1 = arith.constant 0 : i32
    return %arg1, %c0_i32, %c0_i32_0 : i32, i32, i32
  }
  func.func @transform_17(%arg0: i32, %arg1: i32) -> (i32, i32, i32) {
    %c0_i32 = arith.constant 0 : i32
    %c0_i32_0 = arith.constant 0 : i32
    %c0_i32_1 = arith.constant 0 : i32
    return %arg0, %c0_i32, %c0_i32_0 : i32, i32, i32
  }
}

</mosaic_0001>

<llo_original>
// kernel: tpu_custom_call.1
$region0: #{tpu_custom_call.1}
  #allocation0 [shape = 'u32[]', space=smem, size = 0x4, offset = 0x4, fixed_abs, tag = 'smem constant byte address 0x4 - core index']
  #allocation1 [shape = 'u32[72,128]{1,0:T(1,128)}', space=vmem, size = 0x9000, scoped, tag = 'internal scratch']
  %s0 = inlined_call_operand.hbm [shape: f32[2,16,32], index: 0, kind: input, shape index: {}]
  %s1 = inlined_call_operand.vmem [shape: f32[16,32], index: 1, kind: input, shape index: {}]
  %s2 = inlined_call_operand.vmem [shape: f32[2,16,1], index: 2, kind: input, shape index: {}]
  %s3 = inlined_call_operand.hbm [shape: f32[2,1,16], index: 3, kind: input, shape index: {}]
  %s4 = inlined_call_operand.vmem [shape: bf16[3,32,32], index: 4, kind: input, shape index: {}]
  %s5 = inlined_call_operand.hbm [shape: f32[1,32], index: 5, kind: input, shape index: {}]
  %s6 = inlined_call_operand.vmem [shape: bf16[3,32,32], index: 6, kind: input, shape index: {}]
  %s7 = inlined_call_operand.hbm [shape: f32[1,32], index: 7, kind: input, shape index: {}]
  %s8 = inlined_call_operand.hbm [shape: bf16[32,32], index: 8, kind: input, shape index: {}]
  %s9 = inlined_call_operand.hbm [shape: bf16[2,32,96], index: 9, kind: input, shape index: {}]
  %s10 = inlined_call_operand.hbm [shape: bf16[2,32,32], index: 10, kind: input, shape index: {}]
  %s11 = inlined_call_operand.hbm [shape: f32[2,2,1,64], index: 11, kind: input, shape index: {}]
  %s12 = inlined_call_operand.hbm [shape: f32[2,2,1,64], index: 12, kind: input, shape index: {}]
  %s13 = inlined_call_operand.hbm [shape: bf16[2,9,32,64], index: 13, kind: input, shape index: {}]
  %s14 = inlined_call_operand.hbm [shape: f32[2,1,64], index: 14, kind: input, shape index: {}]
  %s15 = inlined_call_operand.vmem [shape: bf16[2,1,64,32], index: 15, kind: input, shape index: {}]
  %s16 = inlined_call_operand.hbm [shape: f32[2,1,32], index: 16, kind: input, shape index: {}]
  %s17 = inlined_call_operand.hbm [shape: f32[2,16,32], index: 17, kind: output, shape index: {}]
  %s18 = sld [smem:[#allocation0]]
  $region153: #{tpu_custom_call.1} parent=0
    _
  %s20 = ssub.s32 1, %s18
  %s21 = scalar_select 0, %s20, %s18
  $region1: #{tpu_custom_call.1} parent=0
    #allocation2 [shape = 'u8[16384]{0}', space=vmem, size = 0x4000, scoped, tag = 'input window, operand 0']
    #allocation3 [shape = 's32[2]{0}', space=sflag, size = 0x8, scoped, tag = 'scoped memory for tpu_custom_call.1']
    #allocation4 [shape = 's32[2]{0}', space=sflag, size = 0x8, scoped, tag = 'scoped memory for tpu_custom_call.1']
    #allocation5 [shape = 'u8[1024]{0}', space=vmem, size = 0x400, scoped, tag = 'input window, operand 3']
    #allocation6 [shape = 's32[2]{0}', space=sflag, size = 0x8, scoped, tag = 'scoped memory for tpu_custom_call.1']
    #allocation7 [shape = 'u8[512]{0}', space=vmem, size = 0x400, scoped, tag = 'input window, operand 5, single buffered']
    #allocation8 [shape = 'u8[512]{0}', space=vmem, size = 0x400, scoped, tag = 'input window, operand 7, single buffered']
    #allocation9 [shape = 's32[1]{0}', space=sflag, size = 0x4, scoped, tag = 'scoped memory for tpu_custom_call.1']
    #allocation10 [shape = 'u8[8192]{0}', space=vmem, size = 0x2000, scoped, tag = 'input window, operand 8, single buffered']
    #allocation11 [shape = 'u8[16384]{0}', space=vmem, size = 0x4000, scoped, tag = 'input window, operand 9']
    #allocation12 [shape = 's32[2]{0}', space=sflag, size = 0x8, scoped, tag = 'scoped memory for tpu_custom_call.1']
    #allocation13 [shape = 'u8[16384]{0}', space=vmem, size = 0x4000, scoped, tag = 'input window, operand 10']
    #allocation14 [shape = 'u8[1024]{0}', space=vmem, size = 0x400, scoped, tag = 'input window, operand 11']
    #allocation15 [shape = 's32[2]{0}', space=sflag, size = 0x8, scoped, tag = 'scoped memory for tpu_custom_call.1']
    #allocation16 [shape = 'u8[1024]{0}', space=vmem, size = 0x400, scoped, tag = 'input window, operand 12']
    #allocation17 [shape = 'u8[147456]{0}', space=vmem, size = 0x24000, scoped, tag = 'input window, operand 13']
    #allocation18 [shape = 's32[2]{0}', space=sflag, size = 0x8, scoped, tag = 'scoped memory for tpu_custom_call.1']
    #allocation19 [shape = 'u8[1024]{0}', space=vmem, size = 0x400, scoped, tag = 'input window, operand 14']
    #allocation20 [shape = 'u8[1024]{0}', space=vmem, size = 0x400, scoped, tag = 'input window, operand 16']
    #allocation21 [shape = 's32[2]{0}', space=sflag, size = 0x8, scoped, tag = 'scoped memory for tpu_custom_call.1']
    #allocation22 [shape = 'u8[16384]{0}', space=vmem, size = 0x4000, scoped, tag = 'output window, operand 0']
    %22 = vsyncpa [#allocation3], 0
    %s23 = scalar_lea.sflag [#allocation3], 1
    %24 = vsyncpa %s23, 0
    %25 = vsyncpa [#allocation6], 0
    %s26 = scalar_lea.sflag [#allocation6], 1
    %27 = vsyncpa %s26, 0
    %28 = vsyncpa [#allocation9], 0
    %29 = vsyncpa [#allocation12], 0
    %s30 = scalar_lea.sflag [#allocation12], 1
    %31 = vsyncpa %s30, 0
    %32 = vsyncpa [#allocation15], 0
    %s33 = scalar_lea.sflag [#allocation15], 1
    %34 = vsyncpa %s33, 0
    %35 = vsyncpa [#allocation18], 0
    %s36 = scalar_lea.sflag [#allocation18], 1
    %37 = vsyncpa %s36, 0
    %38 = vsyncpa [#allocation21], 0
    %s39 = scalar_lea.sflag [#allocation21], 1
    %40 = vsyncpa %s39, 0
    %41 = vsyncpa [#allocation4], 0
    %s42 = scalar_lea.sflag [#allocation4], 1
    %43 = vsyncpa %s42, 0
    loop: start=0, step=1, limit=6
    $region2: #{tpu_custom_call.1} parent=1 // loop_pre_header
      _
    $region3: #{tpu_custom_call.1} parent=1 // loop_header
      %s45 = sphi 0, %s49
      %p46 = scmp.ge.s32.totalorder %s45, 6
      %s52 = sphi 0, %s64
      %s53 = sphi 0, %s60
      %s54 = sphi 0, %s52
      %s55 = sphi 0, %s53
      %s56 = sphi 0, %s54
      %s57 = sphi 0, %s55
      %s67 = sphi 0, %s69
      %s70 = sphi 0, %s67
      %s71 = sphi 0, %s70
      %s87 = sphi 0, %s71
      %s91 = sphi 0, %s91
      %s93 = sphi 0, %s91
      %s94 = sphi 0, %s93
      %s108 = sphi 0, %s94
      %s114 = sphi 0, %s116
      %s117 = sphi 0, %s114
      %s118 = sphi 0, %s117
      %s134 = sphi 0, %s118
      %s140 = sphi 0, %s142
      %s143 = sphi 0, %s140
      %s144 = sphi 0, %s143
      %s160 = sphi 0, %s144
      %s164 = sphi 0, %s164
      %s166 = sphi 0, %s164
      %s167 = sphi 0, %s166
      %s181 = sphi 0, %s167
      %s185 = sphi 0, %s185
      %s187 = sphi 0, %s185
      %s188 = sphi 0, %s187
      %s202 = sphi 0, %s188
      %s206 = sphi 0, %s206
      %s208 = sphi 0, %s206
      %s209 = sphi 0, %s208
      %s223 = sphi 0, %s209
      %s227 = sphi 0, %s227
      %s229 = sphi 0, %s227
      %s230 = sphi 0, %s229
      %s244 = sphi 0, %s230
      %s248 = sphi 0, %s248
      %s250 = sphi 0, %s248
      %s251 = sphi 0, %s250
      %s265 = sphi 0, %s251
      %s271 = sphi 0, %s273
      %s274 = sphi 0, %s271
      %s275 = sphi 0, %s274
      %s291 = sphi 0, %s275
      %s297 = sphi 0, %s299
      %s300 = sphi 0, %s297
      %s301 = sphi 0, %s300
      %s317 = sphi 0, %s301
      %s325 = sphi 0, %s327
      %s328 = sphi 0, %s325
      %s329 = sphi 0, %s328
      %s345 = sphi 0, %s329
      %s353 = sphi 0, %s355
      %s356 = sphi 0, %s353
      %s357 = sphi 0, %s356
      %s373 = sphi 0, %s357
      %s379 = sphi 0, %s381
      %s382 = sphi 0, %s379
      %s383 = sphi 0, %s382
      %s399 = sphi 0, %s383
      %s405 = sphi 0, %s407
      %s408 = sphi 0, %s405
      %s409 = sphi 0, %s408
      %s425 = sphi 0, %s409
      %s431 = sphi 0, %s433
      %s434 = sphi 0, %s431
      %s435 = sphi 0, %s434
      %s451 = sphi 0, %s435
      %s457 = sphi 0, %s459
      %s460 = sphi 0, %s457
      %s461 = sphi 0, %s460
      %s477 = sphi 0, %s461
      %s483 = sphi 0, %s485
      %s486 = sphi 0, %s483
      %s487 = sphi 0, %s486
      %s503 = sphi 0, %s487
    $region4: #{tpu_custom_call.1} parent=1 // loop_header_branch
      %48 = sbr.rel (%p46) target = $region8
    $region5: #{tpu_custom_call.1} parent=1 // loop_body
      %s50 = ssub.s32 %s45, 1
      %s51 = ssub.s32 %s45, 2
      %s58 = sadd.s32 1, %s53
      %p59 = scmp.ge.s32.totalorder %s58, 2
      %s60 = scalar_select %p59, 0, %s58
      %s61 = sadd.s32 1, %s52
      %s62 = scalar_select %p59, %s61, %s52
      %p63 = scmp.ge.s32.totalorder %s62, 2
      %s64 = scalar_select %p63, 0, %s62
      %s65 = ssub.s32 %s52, %s64
      %p66 = scmp.eq.s32.totalorder %s65, 0
      %s68 = sadd.s32 %s67, 1
      %s69 = scalar_select %p66, %s67, %s68
      %p72 = pneg %p66
      %p73 = scmp.eq.s32.totalorder %s45, 3
      %p74 = por %p72, %p73
      %p75 = scmp.ne.s32.totalorder %s67, %s70
      %p76 = scmp.eq.s32.totalorder %s45, 0
      %p77 = por %p75, %p76
      %p78 = scmp.ne.s32.totalorder %s67, %s70
      %p79 = scmp.eq.s32.totalorder %s50, 3
      %p80 = por %p78, %p79
      %p81 = scmp.ne.s32.totalorder %s70, %s71
      %p82 = scmp.eq.s32.totalorder %s50, 0
      %p83 = por %p81, %p82
      %p84 = scmp.ne.s32.totalorder %s70, %s71
      %p85 = scmp.eq.s32.totalorder %s51, 3
      %p86 = por %p84, %p85
      %p88 = scmp.ne.s32.totalorder %s71, %s87
      %p89 = scmp.eq.s32.totalorder %s51, 0
      %p90 = por %p88, %p89
      %s92 = sadd.s32 %s91, 1
      %p95 = scmp.eq.s32.totalorder %s45, 3
      %p96 = scmp.ne.s32.totalorder %s91, %s93
      %p97 = scmp.eq.s32.totalorder %s45, 0
      %p98 = por %p96, %p97
      %p99 = scmp.ne.s32.totalorder %s91, %s93
      %p100 = scmp.eq.s32.totalorder %s50, 3
      %p101 = por %p99, %p100
      %p102 = scmp.ne.s32.totalorder %s93, %s94
      %p103 = scmp.eq.s32.totalorder %s50, 0
      %p104 = por %p102, %p103
      %p105 = scmp.ne.s32.totalorder %s93, %s94
      %p106 = scmp.eq.s32.totalorder %s51, 3
      %p107 = por %p105, %p106
      %p109 = scmp.ne.s32.totalorder %s94, %s108
      %p110 = scmp.eq.s32.totalorder %s51, 0
      %p111 = por %p109, %p110
      %s112 = ssub.s32 %s52, %s64
      %p113 = scmp.eq.s32.totalorder %s112, 0
      %s115 = sadd.s32 %s114, 1
      %s116 = scalar_select %p113, %s114, %s115
      %p119 = pneg %p113
      %p120 = scmp.eq.s32.totalorder %s45, 3
      %p121 = por %p119, %p120
      %p122 = scmp.ne.s32.totalorder %s114, %s117
      %p123 = scmp.eq.s32.totalorder %s45, 0
      %p124 = por %p122, %p123
      %p125 = scmp.ne.s32.totalorder %s114, %s117
      %p126 = scmp.eq.s32.totalorder %s50, 3
      %p127 = por %p125, %p126
      %p128 = scmp.ne.s32.totalorder %s117, %s118
      %p129 = scmp.eq.s32.totalorder %s50, 0
      %p130 = por %p128, %p129
      %p131 = scmp.ne.s32.totalorder %s117, %s118
      %p132 = scmp.eq.s32.totalorder %s51, 3
      %p133 = por %p131, %p132
      %p135 = scmp.ne.s32.totalorder %s118, %s134
      %p136 = scmp.eq.s32.totalorder %s51, 0
      %p137 = por %p135, %p136
      %s138 = ssub.s32 %s52, %s64
      %p139 = scmp.eq.s32.totalorder %s138, 0
      %s141 = sadd.s32 %s140, 1
      %s142 = scalar_select %p139, %s140, %s141
      %p145 = pneg %p139
      %p146 = scmp.eq.s32.totalorder %s45, 3
      %p147 = por %p145, %p146
      %p148 = scmp.ne.s32.totalorder %s140, %s143
      %p149 = scmp.eq.s32.totalorder %s45, 0
      %p150 = por %p148, %p149
      %p151 = scmp.ne.s32.totalorder %s140, %s143
      %p152 = scmp.eq.s32.totalorder %s50, 3
      %p153 = por %p151, %p152
      %p154 = scmp.ne.s32.totalorder %s143, %s144
      %p155 = scmp.eq.s32.totalorder %s50, 0
      %p156 = por %p154, %p155
      %p157 = scmp.ne.s32.totalorder %s143, %s144
      %p158 = scmp.eq.s32.totalorder %s51, 3
      %p159 = por %p157, %p158
      %p161 = scmp.ne.s32.totalorder %s144, %s160
      %p162 = scmp.eq.s32.totalorder %s51, 0
      %p163 = por %p161, %p162
      %s165 = sadd.s32 %s164, 1
      %p168 = scmp.eq.s32.totalorder %s45, 3
      %p169 = scmp.ne.s32.totalorder %s164, %s166
      %p170 = scmp.eq.s32.totalorder %s45, 0
      %p171 = por %p169, %p170
      %p172 = scmp.ne.s32.totalorder %s164, %s166
      %p173 = scmp.eq.s32.totalorder %s50, 3
      %p174 = por %p172, %p173
      %p175 = scmp.ne.s32.totalorder %s166, %s167
      %p176 = scmp.eq.s32.totalorder %s50, 0
      %p177 = por %p175, %p176
      %p178 = scmp.ne.s32.totalorder %s166, %s167
      %p179 = scmp.eq.s32.totalorder %s51, 3
      %p180 = por %p178, %p179
      %p182 = scmp.ne.s32.totalorder %s167, %s181
      %p183 = scmp.eq.s32.totalorder %s51, 0
      %p184 = por %p182, %p183
      %s186 = sadd.s32 %s185, 1
      %p189 = scmp.eq.s32.totalorder %s45, 3
      %p190 = scmp.ne.s32.totalorder %s185, %s187
      %p191 = scmp.eq.s32.totalorder %s45, 0
      %p192 = por %p190, %p191
      %p193 = scmp.ne.s32.totalorder %s185, %s187
      %p194 = scmp.eq.s32.totalorder %s50, 3
      %p195 = por %p193, %p194
      %p196 = scmp.ne.s32.totalorder %s187, %s188
      %p197 = scmp.eq.s32.totalorder %s50, 0
      %p198 = por %p196, %p197
      %p199 = scmp.ne.s32.totalorder %s187, %s188
      %p200 = scmp.eq.s32.totalorder %s51, 3
      %p201 = por %p199, %p200
      %p203 = scmp.ne.s32.totalorder %s188, %s202
      %p204 = scmp.eq.s32.totalorder %s51, 0
      %p205 = por %p203, %p204
      %s207 = sadd.s32 %s206, 1
      %p210 = scmp.eq.s32.totalorder %s45, 3
      %p211 = scmp.ne.s32.totalorder %s206, %s208
      %p212 = scmp.eq.s32.totalorder %s45, 0
      %p213 = por %p211, %p212
      %p214 = scmp.ne.s32.totalorder %s206, %s208
      %p215 = scmp.eq.s32.totalorder %s50, 3
      %p216 = por %p214, %p215
      %p217 = scmp.ne.s32.totalorder %s208, %s209
      %p218 = scmp.eq.s32.totalorder %s50, 0
      %p219 = por %p217, %p218
      %p220 = scmp.ne.s32.totalorder %s208, %s209
      %p221 = scmp.eq.s32.totalorder %s51, 3
      %p222 = por %p220, %p221
      %p224 = scmp.ne.s32.totalorder %s209, %s223
      %p225 = scmp.eq.s32.totalorder %s51, 0
      %p226 = por %p224, %p225
      %s228 = sadd.s32 %s227, 1
      %p231 = scmp.eq.s32.totalorder %s45, 3
      %p232 = scmp.ne.s32.totalorder %s227, %s229
      %p233 = scmp.eq.s32.totalorder %s45, 0
      %p234 = por %p232, %p233
      %p235 = scmp.ne.s32.totalorder %s227, %s229
      %p236 = scmp.eq.s32.totalorder %s50, 3
      %p237 = por %p235, %p236
      %p238 = scmp.ne.s32.totalorder %s229, %s230
      %p239 = scmp.eq.s32.totalorder %s50, 0
      %p240 = por %p238, %p239
      %p241 = scmp.ne.s32.totalorder %s229, %s230
      %p242 = scmp.eq.s32.totalorder %s51, 3
      %p243 = por %p241, %p242
      %p245 = scmp.ne.s32.totalorder %s230, %s244
      %p246 = scmp.eq.s32.totalorder %s51, 0
      %p247 = por %p245, %p246
      %s249 = sadd.s32 %s248, 1
      %p252 = scmp.eq.s32.totalorder %s45, 3
      %p253 = scmp.ne.s32.totalorder %s248, %s250
      %p254 = scmp.eq.s32.totalorder %s45, 0
      %p255 = por %p253, %p254
      %p256 = scmp.ne.s32.totalorder %s248, %s250
      %p257 = scmp.eq.s32.totalorder %s50, 3
      %p258 = por %p256, %p257
      %p259 = scmp.ne.s32.totalorder %s250, %s251
      %p260 = scmp.eq.s32.totalorder %s50, 0
      %p261 = por %p259, %p260
      %p262 = scmp.ne.s32.totalorder %s250, %s251
      %p263 = scmp.eq.s32.totalorder %s51, 3
      %p264 = por %p262, %p263
      %p266 = scmp.ne.s32.totalorder %s251, %s265
      %p267 = scmp.eq.s32.totalorder %s51, 0
      %p268 = por %p266, %p267
      %s269 = ssub.s32 %s53, %s60
      %p270 = scmp.eq.s32.totalorder %s269, 0
      %s272 = sadd.s32 %s271, 1
      %s273 = scalar_select %p270, %s271, %s272
      %p276 = pneg %p270
      %p277 = scmp.eq.s32.totalorder %s45, 3
      %p278 = por %p276, %p277
      %p279 = scmp.ne.s32.totalorder %s271, %s274
      %p280 = scmp.eq.s32.totalorder %s45, 0
      %p281 = por %p279, %p280
      %p282 = scmp.ne.s32.totalorder %s271, %s274
      %p283 = scmp.eq.s32.totalorder %s50, 3
      %p284 = por %p282, %p283
      %p285 = scmp.ne.s32.totalorder %s274, %s275
      %p286 = scmp.eq.s32.totalorder %s50, 0
      %p287 = por %p285, %p286
      %p288 = scmp.ne.s32.totalorder %s274, %s275
      %p289 = scmp.eq.s32.totalorder %s51, 3
      %p290 = por %p288, %p289
      %p292 = scmp.ne.s32.totalorder %s275, %s291
      %p293 = scmp.eq.s32.totalorder %s51, 0
      %p294 = por %p292, %p293
      %s295 = ssub.s32 %s53, %s60
      %p296 = scmp.eq.s32.totalorder %s295, 0
      %s298 = sadd.s32 %s297, 1
      %s299 = scalar_select %p296, %s297, %s298
      %p302 = pneg %p296
      %p303 = scmp.eq.s32.totalorder %s45, 3
      %p304 = por %p302, %p303
      %p305 = scmp.ne.s32.totalorder %s297, %s300
      %p306 = scmp.eq.s32.totalorder %s45, 0
      %p307 = por %p305, %p306
      %p308 = scmp.ne.s32.totalorder %s297, %s300
      %p309 = scmp.eq.s32.totalorder %s50, 3
      %p310 = por %p308, %p309
      %p311 = scmp.ne.s32.totalorder %s300, %s301
      %p312 = scmp.eq.s32.totalorder %s50, 0
      %p313 = por %p311, %p312
      %p314 = scmp.ne.s32.totalorder %s300, %s301
      %p315 = scmp.eq.s32.totalorder %s51, 3
      %p316 = por %p314, %p315
      %p318 = scmp.ne.s32.totalorder %s301, %s317
      %p319 = scmp.eq.s32.totalorder %s51, 0
      %p320 = por %p318, %p319
      %s321 = ssub.s32 %s53, %s60
      %s322 = ssub.s32 %s52, %s64
      %s323 = sor.u32 %s321, %s322
      %p324 = scmp.eq.s32.totalorder %s323, 0
      %s326 = sadd.s32 %s325, 1
      %s327 = scalar_select %p324, %s325, %s326
      %p330 = pneg %p324
      %p331 = scmp.eq.s32.totalorder %s45, 3
      %p332 = por %p330, %p331
      %p333 = scmp.ne.s32.totalorder %s325, %s328
      %p334 = scmp.eq.s32.totalorder %s45, 0
      %p335 = por %p333, %p334
      %p336 = scmp.ne.s32.totalorder %s325, %s328
      %p337 = scmp.eq.s32.totalorder %s50, 3
      %p338 = por %p336, %p337
      %p339 = scmp.ne.s32.totalorder %s328, %s329
      %p340 = scmp.eq.s32.totalorder %s50, 0
      %p341 = por %p339, %p340
      %p342 = scmp.ne.s32.totalorder %s328, %s329
      %p343 = scmp.eq.s32.totalorder %s51, 3
      %p344 = por %p342, %p343
      %p346 = scmp.ne.s32.totalorder %s329, %s345
      %p347 = scmp.eq.s32.totalorder %s51, 0
      %p348 = por %p346, %p347
      %s349 = ssub.s32 %s53, %s60
      %s350 = ssub.s32 %s52, %s64
      %s351 = sor.u32 %s349, %s350
      %p352 = scmp.eq.s32.totalorder %s351, 0
      %s354 = sadd.s32 %s353, 1
      %s355 = scalar_select %p352, %s353, %s354
      %p358 = pneg %p352
      %p359 = scmp.eq.s32.totalorder %s45, 3
      %p360 = por %p358, %p359
      %p361 = scmp.ne.s32.totalorder %s353, %s356
      %p362 = scmp.eq.s32.totalorder %s45, 0
      %p363 = por %p361, %p362
      %p364 = scmp.ne.s32.totalorder %s353, %s356
      %p365 = scmp.eq.s32.totalorder %s50, 3
      %p366 = por %p364, %p365
      %p367 = scmp.ne.s32.totalorder %s356, %s357
      %p368 = scmp.eq.s32.totalorder %s50, 0
      %p369 = por %p367, %p368
      %p370 = scmp.ne.s32.totalorder %s356, %s357
      %p371 = scmp.eq.s32.totalorder %s51, 3
      %p372 = por %p370, %p371
      %p374 = scmp.ne.s32.totalorder %s357, %s373
      %p375 = scmp.eq.s32.totalorder %s51, 0
      %p376 = por %p374, %p375
      %s377 = ssub.s32 %s53, %s60
      %p378 = scmp.eq.s32.totalorder %s377, 0
      %s380 = sadd.s32 %s379, 1
      %s381 = scalar_select %p378, %s379, %s380
      %p384 = pneg %p378
      %p385 = scmp.eq.s32.totalorder %s45, 3
      %p386 = por %p384, %p385
      %p387 = scmp.ne.s32.totalorder %s379, %s382
      %p388 = scmp.eq.s32.totalorder %s45, 0
      %p389 = por %p387, %p388
      %p390 = scmp.ne.s32.totalorder %s379, %s382
      %p391 = scmp.eq.s32.totalorder %s50, 3
      %p392 = por %p390, %p391
      %p393 = scmp.ne.s32.totalorder %s382, %s383
      %p394 = scmp.eq.s32.totalorder %s50, 0
      %p395 = por %p393, %p394
      %p396 = scmp.ne.s32.totalorder %s382, %s383
      %p397 = scmp.eq.s32.totalorder %s51, 3
      %p398 = por %p396, %p397
      %p400 = scmp.ne.s32.totalorder %s383, %s399
      %p401 = scmp.eq.s32.totalorder %s51, 0
      %p402 = por %p400, %p401
      %s403 = ssub.s32 %s53, %s60
      %p404 = scmp.eq.s32.totalorder %s403, 0
      %s406 = sadd.s32 %s405, 1
      %s407 = scalar_select %p404, %s405, %s406
      %p410 = pneg %p404
      %p411 = scmp.eq.s32.totalorder %s45, 3
      %p412 = por %p410, %p411
      %p413 = scmp.ne.s32.totalorder %s405, %s408
      %p414 = scmp.eq.s32.totalorder %s45, 0
      %p415 = por %p413, %p414
      %p416 = scmp.ne.s32.totalorder %s405, %s408
      %p417 = scmp.eq.s32.totalorder %s50, 3
      %p418 = por %p416, %p417
      %p419 = scmp.ne.s32.totalorder %s408, %s409
      %p420 = scmp.eq.s32.totalorder %s50, 0
      %p421 = por %p419, %p420
      %p422 = scmp.ne.s32.totalorder %s408, %s409
      %p423 = scmp.eq.s32.totalorder %s51, 3
      %p424 = por %p422, %p423
      %p426 = scmp.ne.s32.totalorder %s409, %s425
      %p427 = scmp.eq.s32.totalorder %s51, 0
      %p428 = por %p426, %p427
      %s429 = ssub.s32 %s53, %s60
      %p430 = scmp.eq.s32.totalorder %s429, 0
      %s432 = sadd.s32 %s431, 1
      %s433 = scalar_select %p430, %s431, %s432
      %p436 = pneg %p430
      %p437 = scmp.eq.s32.totalorder %s45, 3
      %p438 = por %p436, %p437
      %p439 = scmp.ne.s32.totalorder %s431, %s434
      %p440 = scmp.eq.s32.totalorder %s45, 0
      %p441 = por %p439, %p440
      %p442 = scmp.ne.s32.totalorder %s431, %s434
      %p443 = scmp.eq.s32.totalorder %s50, 3
      %p444 = por %p442, %p443
      %p445 = scmp.ne.s32.totalorder %s434, %s435
      %p446 = scmp.eq.s32.totalorder %s50, 0
      %p447 = por %p445, %p446
      %p448 = scmp.ne.s32.totalorder %s434, %s435
      %p449 = scmp.eq.s32.totalorder %s51, 3
      %p450 = por %p448, %p449
      %p452 = scmp.ne.s32.totalorder %s435, %s451
      %p453 = scmp.eq.s32.totalorder %s51, 0
      %p454 = por %p452, %p453
      %s455 = ssub.s32 %s53, %s60
      %p456 = scmp.eq.s32.totalorder %s455, 0
      %s458 = sadd.s32 %s457, 1
      %s459 = scalar_select %p456, %s457, %s458
      %p462 = pneg %p456
      %p463 = scmp.eq.s32.totalorder %s45, 3
      %p464 = por %p462, %p463
      %p465 = scmp.ne.s32.totalorder %s457, %s460
      %p466 = scmp.eq.s32.totalorder %s45, 0
      %p467 = por %p465, %p466
      %p468 = scmp.ne.s32.totalorder %s457, %s460
      %p469 = scmp.eq.s32.totalorder %s50, 3
      %p470 = por %p468, %p469
      %p471 = scmp.ne.s32.totalorder %s460, %s461
      %p472 = scmp.eq.s32.totalorder %s50, 0
      %p473 = por %p471, %p472
      %p474 = scmp.ne.s32.totalorder %s460, %s461
      %p475 = scmp.eq.s32.totalorder %s51, 3
      %p476 = por %p474, %p475
      %p478 = scmp.ne.s32.totalorder %s461, %s477
      %p479 = scmp.eq.s32.totalorder %s51, 0
      %p480 = por %p478, %p479
      %s481 = ssub.s32 %s52, %s64
      %p482 = scmp.eq.s32.totalorder %s481, 0
      %s484 = sadd.s32 %s483, 1
      %s485 = scalar_select %p482, %s483, %s484
      %p488 = pneg %p482
      %p489 = scmp.eq.s32.totalorder %s45, 3
      %p490 = por %p488, %p489
      %p491 = scmp.ne.s32.totalorder %s483, %s486
      %p492 = scmp.eq.s32.totalorder %s45, 0
      %p493 = por %p491, %p492
      %p494 = scmp.ne.s32.totalorder %s483, %s486
      %p495 = scmp.eq.s32.totalorder %s50, 3
      %p496 = por %p494, %p495
      %p497 = scmp.ne.s32.totalorder %s486, %s487
      %p498 = scmp.eq.s32.totalorder %s50, 0
      %p499 = por %p497, %p498
      %p500 = scmp.ne.s32.totalorder %s486, %s487
      %p501 = scmp.eq.s32.totalorder %s51, 3
      %p502 = por %p500, %p501
      %p504 = scmp.ne.s32.totalorder %s487, %s503
      %p505 = scmp.eq.s32.totalorder %s51, 0
      %p506 = por %p504, %p505
      %p507 = scmp.le.s32.totalorder 1, %s45
      %p508 = scmp.lt.s32.totalorder %s45, 5
      %p509 = pnand %p507, %p508
      %p510 = pneg %p509
      // Predicated region
      $region9: #{tpu_custom_call.1} parent=5 // pred_check
        _
      $region10: #{tpu_custom_call.1} parent=5 // pred_check_branch
        %512 = sbr.rel (%p509) target = $region12
      $region11: #{tpu_custom_call.1} parent=5 // pred_region
        %s513 = ssub.s32 %s45, 1
        // Predicated region
        $region13: #{tpu_custom_call.1} parent=11 // pred_check
          %p514 = pneg %p104
        $region14: #{tpu_custom_call.1} parent=11 // pred_check_branch
          %516 = sbr.rel (%p514) target = $region16
        $region15: #{tpu_custom_call.1} parent=11 // pred_region
          _
        $region16: #{tpu_custom_call.1} parent=11 // pred_fallthru
          _
        // Predicated region
        $region17: #{tpu_custom_call.1} parent=11 // pred_check
          %p517 = pneg %p177
        $region18: #{tpu_custom_call.1} parent=11 // pred_check_branch
          %519 = sbr.rel (%p517) target = $region20
        $region19: #{tpu_custom_call.1} parent=11 // pred_region
          _
        $region20: #{tpu_custom_call.1} parent=11 // pred_fallthru
          _
        // Predicated region
        $region21: #{tpu_custom_call.1} parent=11 // pred_check
          %p520 = pneg %p198
        $region22: #{tpu_custom_call.1} parent=11 // pred_check_branch
          %522 = sbr.rel (%p520) target = $region24
        $region23: #{tpu_custom_call.1} parent=11 // pred_region
          %524 = vsyncadd [#allocation6], 0
          %s526 = sshll.u32 %s5, 4
          %s527 = int_to_ptr.hbm [resolvable:$true] %s526
          %s528 = sshll.u32 [#allocation7], 4
          %s529 = int_to_ptr.vmem [resolvable:$true] %s528
          %531 = dma.hbm_to_vmem [thread:$0]  %s527, 16, %s529, [#allocation6]
        $region24: #{tpu_custom_call.1} parent=11 // pred_fallthru
          _
        // Predicated region
        $region25: #{tpu_custom_call.1} parent=11 // pred_check
          %p532 = pneg %p219
        $region26: #{tpu_custom_call.1} parent=11 // pred_check_branch
          %534 = sbr.rel (%p532) target = $region28
        $region27: #{tpu_custom_call.1} parent=11 // pred_region
          _
        $region28: #{tpu_custom_call.1} parent=11 // pred_fallthru
          _
        // Predicated region
        $region29: #{tpu_custom_call.1} parent=11 // pred_check
          %p535 = pneg %p240
        $region30: #{tpu_custom_call.1} parent=11 // pred_check_branch
          %537 = sbr.rel (%p535) target = $region32
        $region31: #{tpu_custom_call.1} parent=11 // pred_region
          %539 = vsyncadd [#allocation9], 0
          %s541 = sshll.u32 %s7, 4
          %s542 = int_to_ptr.hbm [resolvable:$true] %s541
          %s543 = sshll.u32 [#allocation8], 4
          %s544 = int_to_ptr.vmem [resolvable:$true] %s543
          %546 = dma.hbm_to_vmem [thread:$0]  %s542, 16, %s544, [#allocation9]
        $region32: #{tpu_custom_call.1} parent=11 // pred_fallthru
          _
        // Predicated region
        $region33: #{tpu_custom_call.1} parent=11 // pred_check
          %p547 = pneg %p261
        $region34: #{tpu_custom_call.1} parent=11 // pred_check_branch
          %549 = sbr.rel (%p547) target = $region36
        $region35: #{tpu_custom_call.1} parent=11 // pred_region
          %551 = vsyncadd [#allocation9], 0
          %s552 = sshll.u32 %s8, 4
          %s553 = int_to_ptr.hbm [resolvable:$true] %s552
          %s554 = sshll.u32 [#allocation10], 4
          %s555 = int_to_ptr.vmem [resolvable:$true] %s554
          %560 = dma.hbm_to_vmem [thread:$0]  %s553, 256, %s555, [#allocation9], 64, 64, 4
        $region36: #{tpu_custom_call.1} parent=11 // pred_fallthru
          _
      $region12: #{tpu_custom_call.1} parent=5 // pred_fallthru
        _
      %p561 = scmp.lt.s32.totalorder %s45, 4
      // Predicated region
      $region37: #{tpu_custom_call.1} parent=5 // pred_check
        %p562 = pneg %p561
      $region38: #{tpu_custom_call.1} parent=5 // pred_check_branch
        %564 = sbr.rel (%p562) target = $region40
      $region39: #{tpu_custom_call.1} parent=5 // pred_region
        // Predicated region
        $region41: #{tpu_custom_call.1} parent=39 // pred_check
          %p565 = pneg %p77
        $region42: #{tpu_custom_call.1} parent=39 // pred_check_branch
          %567 = sbr.rel (%p565) target = $region44
        $region43: #{tpu_custom_call.1} parent=39 // pred_region
          %s568 = sand.u32 %s67, 1
          %s569 = scalar_lea.sflag [#allocation3], %s568
          %s570 = sand.u32 %s67, 1
          %s571 = smul.addr %s570, 16
          %s572 = scalar_lea.vmem [#allocation2], %s571
          %574 = vsyncadd %s569, 0
          %s575 = smul.addr %s52, 2
          %s576 = smul.addr %s575, 8
          %s577 = scalar_lea.hbm %s0, %s576
          %s578 = sshll.u32 %s577, 4
          %s579 = int_to_ptr.hbm [resolvable:$true] %s578
          %s580 = sshll.u32 %s572, 4
          %s581 = int_to_ptr.vmem [resolvable:$true] %s580
          %586 = dma.hbm_to_vmem [thread:$0]  %s579, 256, %s581, %s569, 128, 128, 8
        $region44: #{tpu_custom_call.1} parent=39 // pred_fallthru
          _
        // Predicated region
        $region45: #{tpu_custom_call.1} parent=39 // pred_check
          %p587 = pneg %p124
        $region46: #{tpu_custom_call.1} parent=39 // pred_check_branch
          %589 = sbr.rel (%p587) target = $region48
        $region47: #{tpu_custom_call.1} parent=39 // pred_region
          %p590 = scmp.lt.s32.totalorder %s52, 1
          %s591 = scalar_select %p590, %s52, 1
          %s592 = smul.addr %s591, 2
          %s593 = smul.addr %s592, 8
          %s594 = scalar_lea.vmem %s2, %s593
        $region48: #{tpu_custom_call.1} parent=39 // pred_fallthru
          _
        // Predicated region
        $region49: #{tpu_custom_call.1} parent=39 // pred_check
          %p595 = pneg %p150
        $region50: #{tpu_custom_call.1} parent=39 // pred_check_branch
          %597 = sbr.rel (%p595) target = $region52
        $region51: #{tpu_custom_call.1} parent=39 // pred_region
          %s598 = sand.u32 %s45, 1
          %s599 = scalar_lea.sflag [#allocation6], %s598
          %s600 = sand.u32 %s140, 1
          %s601 = scalar_lea.vmem [#allocation5], %s600
          %603 = vsyncadd %s599, 0
          %s604 = scalar_lea.hbm %s3, %s52
          %s606 = sshll.u32 %s604, 4
          %s607 = int_to_ptr.hbm [resolvable:$true] %s606
          %s608 = sshll.u32 %s601, 4
          %s609 = int_to_ptr.vmem [resolvable:$true] %s608
          %611 = dma.hbm_to_vmem [thread:$0]  %s607, 16, %s609, %s599
        $region52: #{tpu_custom_call.1} parent=39 // pred_fallthru
          _
        // Predicated region
        $region53: #{tpu_custom_call.1} parent=39 // pred_check
          %p612 = pneg %p281
        $region54: #{tpu_custom_call.1} parent=39 // pred_check_branch
          %614 = sbr.rel (%p612) target = $region56
        $region55: #{tpu_custom_call.1} parent=39 // pred_region
          %s615 = sand.u32 %s45, 1
          %s616 = scalar_lea.sflag [#allocation12], %s615
          %s617 = sand.u32 %s271, 1
          %s618 = smul.addr %s617, 16
          %s619 = scalar_lea.vmem [#allocation11], %s618
          %621 = vsyncadd %s616, 0
          %s622 = smul.addr %s53, 4
          %s623 = smul.addr %s622, 4
          %s624 = scalar_lea.hbm %s9, %s623
          %s625 = sshll.u32 %s624, 4
          %s626 = int_to_ptr.hbm [resolvable:$true] %s625
          %s627 = sshll.u32 %s619, 4
          %s628 = int_to_ptr.vmem [resolvable:$true] %s627
          %633 = dma.hbm_to_vmem [thread:$0]  %s626, 256, %s628, %s616, 64, 64, 4
        $region56: #{tpu_custom_call.1} parent=39 // pred_fallthru
          _
        // Predicated region
        $region57: #{tpu_custom_call.1} parent=39 // pred_check
          %p634 = pneg %p307
        $region58: #{tpu_custom_call.1} parent=39 // pred_check_branch
          %636 = sbr.rel (%p634) target = $region60
        $region59: #{tpu_custom_call.1} parent=39 // pred_region
          %s637 = sand.u32 %s45, 1
          %s638 = scalar_lea.sflag [#allocation12], %s637
          %s639 = sand.u32 %s297, 1
          %s640 = smul.addr %s639, 16
          %s641 = scalar_lea.vmem [#allocation13], %s640
          %643 = vsyncadd %s638, 0
          %s644 = smul.addr %s53, 4
          %s645 = smul.addr %s644, 4
          %s646 = scalar_lea.hbm %s10, %s645
          %s647 = sshll.u32 %s646, 4
          %s648 = int_to_ptr.hbm [resolvable:$true] %s647
          %s649 = sshll.u32 %s641, 4
          %s650 = int_to_ptr.vmem [resolvable:$true] %s649
          %655 = dma.hbm_to_vmem [thread:$0]  %s648, 256, %s650, %s638, 64, 64, 4
        $region60: #{tpu_custom_call.1} parent=39 // pred_fallthru
          _
        // Predicated region
        $region61: #{tpu_custom_call.1} parent=39 // pred_check
          %p656 = pneg %p335
        $region62: #{tpu_custom_call.1} parent=39 // pred_check_branch
          %658 = sbr.rel (%p656) target = $region64
        $region63: #{tpu_custom_call.1} parent=39 // pred_region
          %s659 = sand.u32 %s45, 1
          %s660 = scalar_lea.sflag [#allocation15], %s659
          %s661 = sand.u32 %s325, 1
          %s662 = scalar_lea.vmem [#allocation14], %s661
          %664 = vsyncadd %s660, 0
          %s665 = smul.addr %s53, 2
          %s666 = sadd.s32 %s52, %s665
          %s667 = scalar_lea.hbm %s11, %s666
          %s669 = sshll.u32 %s667, 4
          %s670 = int_to_ptr.hbm [resolvable:$true] %s669
          %s671 = sshll.u32 %s662, 4
          %s672 = int_to_ptr.vmem [resolvable:$true] %s671
          %674 = dma.hbm_to_vmem [thread:$0]  %s670, 16, %s672, %s660
        $region64: #{tpu_custom_call.1} parent=39 // pred_fallthru
          _
        // Predicated region
        $region65: #{tpu_custom_call.1} parent=39 // pred_check
          %p675 = pneg %p363
        $region66: #{tpu_custom_call.1} parent=39 // pred_check_branch
          %677 = sbr.rel (%p675) target = $region68
        $region67: #{tpu_custom_call.1} parent=39 // pred_region
          %s678 = sand.u32 %s45, 1
          %s679 = scalar_lea.sflag [#allocation15], %s678
          %s680 = sand.u32 %s353, 1
          %s681 = scalar_lea.vmem [#allocation16], %s680
          %683 = vsyncadd %s679, 0
          %s684 = smul.addr %s53, 2
          %s685 = sadd.s32 %s52, %s684
          %s686 = scalar_lea.hbm %s12, %s685
          %s688 = sshll.u32 %s686, 4
          %s689 = int_to_ptr.hbm [resolvable:$true] %s688
          %s690 = sshll.u32 %s681, 4
          %s691 = int_to_ptr.vmem [resolvable:$true] %s690
          %693 = dma.hbm_to_vmem [thread:$0]  %s689, 16, %s691, %s679
        $region68: #{tpu_custom_call.1} parent=39 // pred_fallthru
          _
        // Predicated region
        $region69: #{tpu_custom_call.1} parent=39 // pred_check
          %p694 = pneg %p389
        $region70: #{tpu_custom_call.1} parent=39 // pred_check_branch
          %696 = sbr.rel (%p694) target = $region72
        $region71: #{tpu_custom_call.1} parent=39 // pred_region
          %s697 = sand.u32 %s45, 1
          %s698 = scalar_lea.sflag [#allocation18], %s697
          %s699 = sand.u32 %s379, 1
          %s700 = smul.addr %s699, 144
          %s701 = scalar_lea.vmem [#allocation17], %s700
          %703 = vsyncadd %s698, 0
          %s704 = smul.addr %s53, 36
          %s705 = smul.addr %s704, 4
          %s706 = scalar_lea.hbm %s13, %s705
          %s707 = sshll.u32 %s706, 4
          %s708 = int_to_ptr.hbm [resolvable:$true] %s707
          %s709 = sshll.u32 %s701, 4
          %s710 = int_to_ptr.vmem [resolvable:$true] %s709
          %715 = dma.hbm_to_vmem [thread:$0]  %s708, 2304, %s710, %s698, 64, 64, 4
        $region72: #{tpu_custom_call.1} parent=39 // pred_fallthru
          _
        // Predicated region
        $region73: #{tpu_custom_call.1} parent=39 // pred_check
          %p716 = pneg %p415
        $region74: #{tpu_custom_call.1} parent=39 // pred_check_branch
          %718 = sbr.rel (%p716) target = $region76
        $region75: #{tpu_custom_call.1} parent=39 // pred_region
          %s719 = sand.u32 %s45, 1
          %s720 = scalar_lea.sflag [#allocation18], %s719
          %s721 = sand.u32 %s405, 1
          %s722 = scalar_lea.vmem [#allocation19], %s721
          %724 = vsyncadd %s720, 0
          %s725 = scalar_lea.hbm %s14, %s53
          %s727 = sshll.u32 %s725, 4
          %s728 = int_to_ptr.hbm [resolvable:$true] %s727
          %s729 = sshll.u32 %s722, 4
          %s730 = int_to_ptr.vmem [resolvable:$true] %s729
          %732 = dma.hbm_to_vmem [thread:$0]  %s728, 16, %s730, %s720
        $region76: #{tpu_custom_call.1} parent=39 // pred_fallthru
          _
        // Predicated region
        $region77: #{tpu_custom_call.1} parent=39 // pred_check
          %p733 = pneg %p441
        $region78: #{tpu_custom_call.1} parent=39 // pred_check_branch
          %735 = sbr.rel (%p733) target = $region80
        $region79: #{tpu_custom_call.1} parent=39 // pred_region
          %p736 = scmp.lt.s32.totalorder %s53, 1
          %s737 = scalar_select %p736, %s53, 1
          %s738 = smul.addr %s737, 8
          %s739 = smul.addr %s738, 4
          %s740 = scalar_lea.vmem %s15, %s739
        $region80: #{tpu_custom_call.1} parent=39 // pred_fallthru
          _
        // Predicated region
        $region81: #{tpu_custom_call.1} parent=39 // pred_check
          %p741 = pneg %p467
        $region82: #{tpu_custom_call.1} parent=39 // pred_check_branch
          %743 = sbr.rel (%p741) target = $region84
        $region83: #{tpu_custom_call.1} parent=39 // pred_region
          %s744 = sand.u32 %s457, 1
          %s745 = scalar_lea.sflag [#allocation21], %s744
          %s746 = sand.u32 %s457, 1
          %s747 = scalar_lea.vmem [#allocation20], %s746
          %749 = vsyncadd %s745, 0
          %s750 = scalar_lea.hbm %s16, %s53
          %s752 = sshll.u32 %s750, 4
          %s753 = int_to_ptr.hbm [resolvable:$true] %s752
          %s754 = sshll.u32 %s747, 4
          %s755 = int_to_ptr.vmem [resolvable:$true] %s754
          %757 = dma.hbm_to_vmem [thread:$0]  %s753, 16, %s755, %s745
        $region84: #{tpu_custom_call.1} parent=39 // pred_fallthru
          _
      $region40: #{tpu_custom_call.1} parent=5 // pred_fallthru
        _
      %p758 = scmp.le.s32.totalorder 1, %s45
      %p759 = scmp.lt.s32.totalorder %s45, 5
      %p760 = pnand %p758, %p759
      %p761 = pneg %p760
      // Predicated region
      $region85: #{tpu_custom_call.1} parent=5 // pred_check
        _
      $region86: #{tpu_custom_call.1} parent=5 // pred_check_branch
        %763 = sbr.rel (%p760) target = $region88
      $region87: #{tpu_custom_call.1} parent=5 // pred_region
        %s764 = ssub.s32 %s45, 1
        %s765 = sand.u32 %s70, 1
        %s766 = scalar_lea.sflag [#allocation3], %s765
        %s767 = sand.u32 %s70, 1
        %s768 = smul.addr %s767, 16
        %s769 = scalar_lea.vmem [#allocation2], %s768
        // Predicated region
        $region89: #{tpu_custom_call.1} parent=87 // pred_check
          %p770 = pneg %p83
        $region90: #{tpu_custom_call.1} parent=87 // pred_check_branch
          %772 = sbr.rel (%p770) target = $region92
        $region91: #{tpu_custom_call.1} parent=87 // pred_region
          %774 = dma.done %s766, 256
        $region92: #{tpu_custom_call.1} parent=87 // pred_fallthru
          _
        %s775 = sand.u32 %s50, 1
        %s776 = scalar_lea.sflag [#allocation6], %s775
        %s777 = sand.u32 %s143, 1
        %s778 = scalar_lea.vmem [#allocation5], %s777
        // Predicated region
        $region93: #{tpu_custom_call.1} parent=87 // pred_check
          %p779 = pneg %p156
        $region94: #{tpu_custom_call.1} parent=87 // pred_check_branch
          %781 = sbr.rel (%p779) target = $region96
        $region95: #{tpu_custom_call.1} parent=87 // pred_region
          %783 = dma.done %s776, 16
        $region96: #{tpu_custom_call.1} parent=87 // pred_fallthru
          _
        // Predicated region
        $region97: #{tpu_custom_call.1} parent=87 // pred_check
          %p784 = pneg %p198
        $region98: #{tpu_custom_call.1} parent=87 // pred_check_branch
          %786 = sbr.rel (%p784) target = $region100
        $region99: #{tpu_custom_call.1} parent=87 // pred_region
          %788 = dma.done [#allocation6], 16
        $region100: #{tpu_custom_call.1} parent=87 // pred_fallthru
          _
        // Predicated region
        $region101: #{tpu_custom_call.1} parent=87 // pred_check
          %p789 = pneg %p240
        $region102: #{tpu_custom_call.1} parent=87 // pred_check_branch
          %791 = sbr.rel (%p789) target = $region104
        $region103: #{tpu_custom_call.1} parent=87 // pred_region
          %793 = dma.done [#allocation9], 16
        $region104: #{tpu_custom_call.1} parent=87 // pred_fallthru
          _
        // Predicated region
        $region105: #{tpu_custom_call.1} parent=87 // pred_check
          %p794 = pneg %p261
        $region106: #{tpu_custom_call.1} parent=87 // pred_check_branch
          %796 = sbr.rel (%p794) target = $region108
        $region107: #{tpu_custom_call.1} parent=87 // pred_region
          %798 = dma.done [#allocation9], 256
        $region108: #{tpu_custom_call.1} parent=87 // pred_fallthru
          _
        %s799 = sand.u32 %s50, 1
        %s800 = scalar_lea.sflag [#allocation12], %s799
        %s801 = sand.u32 %s274, 1
        %s802 = smul.addr %s801, 16
        %s803 = scalar_lea.vmem [#allocation11], %s802
        // Predicated region
        $region109: #{tpu_custom_call.1} parent=87 // pred_check
          %p804 = pneg %p287
        $region110: #{tpu_custom_call.1} parent=87 // pred_check_branch
          %806 = sbr.rel (%p804) target = $region112
        $region111: #{tpu_custom_call.1} parent=87 // pred_region
          %808 = dma.done %s800, 256
        $region112: #{tpu_custom_call.1} parent=87 // pred_fallthru
          _
        %s809 = sand.u32 %s50, 1
        %s810 = scalar_lea.sflag [#allocation12], %s809
        %s811 = sand.u32 %s300, 1
        %s812 = smul.addr %s811, 16
        %s813 = scalar_lea.vmem [#allocation13], %s812
        // Predicated region
        $region113: #{tpu_custom_call.1} parent=87 // pred_check
          %p814 = pneg %p313
        $region114: #{tpu_custom_call.1} parent=87 // pred_check_branch
          %816 = sbr.rel (%p814) target = $region116
        $region115: #{tpu_custom_call.1} parent=87 // pred_region
          %818 = dma.done %s810, 256
        $region116: #{tpu_custom_call.1} parent=87 // pred_fallthru
          _
        %s819 = sand.u32 %s50, 1
        %s820 = scalar_lea.sflag [#allocation15], %s819
        %s821 = sand.u32 %s328, 1
        %s822 = scalar_lea.vmem [#allocation14], %s821
        // Predicated region
        $region117: #{tpu_custom_call.1} parent=87 // pred_check
          %p823 = pneg %p341
        $region118: #{tpu_custom_call.1} parent=87 // pred_check_branch
          %825 = sbr.rel (%p823) target = $region120
        $region119: #{tpu_custom_call.1} parent=87 // pred_region
          %827 = dma.done %s820, 16
        $region120: #{tpu_custom_call.1} parent=87 // pred_fallthru
          _
        %s828 = sand.u32 %s50, 1
        %s829 = scalar_lea.sflag [#allocation15], %s828
        %s830 = sand.u32 %s356, 1
        %s831 = scalar_lea.vmem [#allocation16], %s830
        // Predicated region
        $region121: #{tpu_custom_call.1} parent=87 // pred_check
          %p832 = pneg %p369
        $region122: #{tpu_custom_call.1} parent=87 // pred_check_branch
          %834 = sbr.rel (%p832) target = $region124
        $region123: #{tpu_custom_call.1} parent=87 // pred_region
          %836 = dma.done %s829, 16
        $region124: #{tpu_custom_call.1} parent=87 // pred_fallthru
          _
        %s837 = sand.u32 %s50, 1
        %s838 = scalar_lea.sflag [#allocation18], %s837
        %s839 = sand.u32 %s382, 1
        %s840 = smul.addr %s839, 144
        %s841 = scalar_lea.vmem [#allocation17], %s840
        // Predicated region
        $region125: #{tpu_custom_call.1} parent=87 // pred_check
          %p842 = pneg %p395
        $region126: #{tpu_custom_call.1} parent=87 // pred_check_branch
          %844 = sbr.rel (%p842) target = $region128
        $region127: #{tpu_custom_call.1} parent=87 // pred_region
          %846 = dma.done %s838, 2304
        $region128: #{tpu_custom_call.1} parent=87 // pred_fallthru
          _
        %s847 = sand.u32 %s50, 1
        %s848 = scalar_lea.sflag [#allocation18], %s847
        %s849 = sand.u32 %s408, 1
        %s850 = scalar_lea.vmem [#allocation19], %s849
        // Predicated region
        $region129: #{tpu_custom_call.1} parent=87 // pred_check
          %p851 = pneg %p421
        $region130: #{tpu_custom_call.1} parent=87 // pred_check_branch
          %853 = sbr.rel (%p851) target = $region132
        $region131: #{tpu_custom_call.1} parent=87 // pred_region
          %855 = dma.done %s848, 16
        $region132: #{tpu_custom_call.1} parent=87 // pred_fallthru
          _
        %s856 = sand.u32 %s460, 1
        %s857 = scalar_lea.sflag [#allocation21], %s856
        %s858 = sand.u32 %s460, 1
        %s859 = scalar_lea.vmem [#allocation20], %s858
        // Predicated region
        $region133: #{tpu_custom_call.1} parent=87 // pred_check
          %p860 = pneg %p473
        $region134: #{tpu_custom_call.1} parent=87 // pred_check_branch
          %862 = sbr.rel (%p860) target = $region136
        $region135: #{tpu_custom_call.1} parent=87 // pred_region
          %864 = dma.done %s857, 16
        $region136: #{tpu_custom_call.1} parent=87 // pred_fallthru
          _
        %s865 = sand.u32 %s70, 1
        %s866 = scalar_lea.sflag [#allocation3], %s865
        %s867 = sand.u32 %s70, 1
        %s868 = smul.addr %s867, 16
        %s869 = scalar_lea.vmem [#allocation2], %s868
        %p870 = pneg %p83
        %p871 = pneg %p80
        %p872 = pneg %p104
        %p873 = pneg %p101
        %p874 = scmp.lt.s32.totalorder %s54, 1
        %s875 = scalar_select %p874, %s54, 1
        %s876 = smul.addr %s875, 2
        %s877 = smul.addr %s876, 8
        %s878 = scalar_lea.vmem %s2, %s877
        %p879 = pneg %p130
        %p880 = pneg %p127
        %s881 = sand.u32 %s50, 1
        %s882 = scalar_lea.sflag [#allocation6], %s881
        %s883 = sand.u32 %s143, 1
        %s884 = scalar_lea.vmem [#allocation5], %s883
        %p885 = pneg %p156
        %p886 = pneg %p153
        %p887 = pneg %p177
        %p888 = pneg %p174
        %p889 = pneg %p198
        %p890 = pneg %p195
        %p891 = pneg %p219
        %p892 = pneg %p216
        %p893 = pneg %p240
        %p894 = pneg %p237
        %p895 = pneg %p261
        %p896 = pneg %p258
        %s897 = sand.u32 %s50, 1
        %s898 = scalar_lea.sflag [#allocation12], %s897
        %s899 = sand.u32 %s274, 1
        %s900 = smul.addr %s899, 16
        %s901 = scalar_lea.vmem [#allocation11], %s900
        %p902 = pneg %p287
        %p903 = pneg %p284
        %s904 = sand.u32 %s50, 1
        %s905 = scalar_lea.sflag [#allocation12], %s904
        %s906 = sand.u32 %s300, 1
        %s907 = smul.addr %s906, 16
        %s908 = scalar_lea.vmem [#allocation13], %s907
        %p909 = pneg %p313
        %p910 = pneg %p310
        %s911 = sand.u32 %s50, 1
        %s912 = scalar_lea.sflag [#allocation15], %s911
        %s913 = sand.u32 %s328, 1
        %s914 = scalar_lea.vmem [#allocation14], %s913
        %p915 = pneg %p341
        %p916 = pneg %p338
        %s917 = sand.u32 %s50, 1
        %s918 = scalar_lea.sflag [#allocation15], %s917
        %s919 = sand.u32 %s356, 1
        %s920 = scalar_lea.vmem [#allocation16], %s919
        %p921 = pneg %p369
        %p922 = pneg %p366
        %s923 = sand.u32 %s50, 1
        %s924 = scalar_lea.sflag [#allocation18], %s923
        %s925 = sand.u32 %s382, 1
        %s926 = smul.addr %s925, 144
        %s927 = scalar_lea.vmem [#allocation17], %s926
        %p928 = pneg %p395
        %p929 = pneg %p392
        %s930 = sand.u32 %s50, 1
        %s931 = scalar_lea.sflag [#allocation18], %s930
        %s932 = sand.u32 %s408, 1
        %s933 = scalar_lea.vmem [#allocation19], %s932
        %p934 = pneg %p421
        %p935 = pneg %p418
        %p936 = scmp.lt.s32.totalorder %s55, 1
        %s937 = scalar_select %p936, %s55, 1
        %s938 = smul.addr %s937, 8
        %s939 = smul.addr %s938, 4
        %s940 = scalar_lea.vmem %s15, %s939
        %p941 = pneg %p447
        %p942 = pneg %p444
        %s943 = sand.u32 %s460, 1
        %s944 = scalar_lea.sflag [#allocation21], %s943
        %s945 = sand.u32 %s460, 1
        %s946 = scalar_lea.vmem [#allocation20], %s945
        %p947 = pneg %p473
        %p948 = pneg %p470
        %p949 = pneg %p499
        %p950 = pneg %p496
        %s951 = sand.u32 %s486, 1
        %s952 = scalar_lea.sflag [#allocation4], %s951
        %s953 = sand.u32 %s486, 1
        %s954 = smul.addr %s953, 16
        %s955 = scalar_lea.vmem [#allocation22], %s954
        %p956 = scmp.lt.s32.totalorder %s54, 1
        %s957 = scalar_select %p956, %s54, 1
        %s958 = smul.addr %s957, 2
        %s959 = smul.addr %s958, 8
        %s960 = scalar_lea.vmem %s2, %s959
        %p961 = scmp.lt.s32.totalorder %s55, 1
        %s962 = scalar_select %p961, %s55, 1
        %s963 = smul.addr %s962, 8
        %s964 = smul.addr %s963, 4
        %s965 = scalar_lea.vmem %s15, %s964
        %v967 = vld [vmem:[%s960] sm:$0xff]
        %v968 = vld [vmem:[%s960 + $0x8] sm:$0xff]
        %v969 = vld [vmem:[%s778] sm:$0x1]
        %p970 = scmp.eq.s32.totalorder %s55, 0
        // Predicated region
        $region137: #{tpu_custom_call.1} parent=87 // pred_check
          %p971 = pneg %p970
        $region138: #{tpu_custom_call.1} parent=87 // pred_check_branch
          %973 = sbr.rel (%p971) target = $region140
        $region139: #{tpu_custom_call.1} parent=87 // pred_region
          %v974 = vld [vmem:[%s769] sm:$0xff]
          %v975 = vld [vmem:[%s769 + $0x8] sm:$0xff]
          %v976 = vld [vmem:[%s4] sm:$0xf]
          %v977 = vld [vmem:[%s4 + $0x4] sm:$0xf]
          %v978 = vld [vmem:[%s4 + $0x8] sm:$0xf]
          %v979 = vld [vmem:[%s4 + $0xc] sm:$0xf]
          %v980 = vld [vmem:[%s4 + $0x10] sm:$0xf]
          %v981 = vld [vmem:[%s4 + $0x14] sm:$0xf]
          %v982 = vld [vmem:[%s4 + $0x18] sm:$0xf]
          %v983 = vld [vmem:[%s4 + $0x1c] sm:$0xf]
          %v984 = vld [vmem:[%s4 + $0x20] sm:$0xf]
          %v985 = vld [vmem:[%s4 + $0x24] sm:$0xf]
          %v986 = vld [vmem:[%s4 + $0x28] sm:$0xf]
          %v987 = vld [vmem:[%s4 + $0x2c] sm:$0xf]
          %v988 = vld [vmem:[#allocation7] sm:$0x1]
          %v989 = vpack.c.bf16 %v974, %v974
          %v990 = vpack.c.bf16 %v975, %v975
          %v993 = vunpack.c.l.b16 %v989
          %v994 = vunpack.c.l.b16 %v990
          %v995 = vpack.c.b16 %v994, %v993
          %v997 = vshrl.u32 %v995, 16
          %v999 = vrot.slane %v997, 7
          %v1000 = vshll.u32 %v995, 16
          %v1002 = vor.u32 %v999, %v1000
          %vm1005 = vcmask 1040384
          %vm1006 = vsmask.f32 256
          %vm1007 = vmand %vm1005, %vm1006
          %v1008 = vsel %vm1007, 0, %v1002
          %v1009 = vsel %vm1007, %v999, 0
          %vm1010 = vsmask.f32 7424
          %v1012 = vshrl.u32 %v1008, 16
          %v1014 = vshll.u32 %v1008, 16
          %v1016 = vrot.slane %v1014, 1
          %v1017 = vor.u32 %v1012, %v1016
          %v1019 = vshll.u32 %v1009, 16
          %v1021 = vrot.slane %v1019, 1
          %v1022 = vsel %vm1010, %v1017, %v1021
          %v1027 = vunpack.c.l.b16 %v980
          %v1028 = vunpack.c.l.b16 %v981
          %v1029 = vunpack.c.l.b16 %v982
          %v1030 = vunpack.c.l.b16 %v983
          %v1031 = vpack.c.b16 %v1028, %v1027
          %v1032 = vpack.c.b16 %v1030, %v1029
          %vm1035 = vcmask 261120
          %v1037 = vsel %vm1035, %v1022, 0
          %1039 = vmatpush.bf16.msra.mxu0 0
          %1040 = vmatpush.bf16.msra.mxu0 0
          %1041 = vmatpush.bf16.msra.mxu0 0
          %1042 = vmatpush.bf16.msra.mxu0 0
          %1043 = vmatpush.bf16.msra.mxu0 0
          %1044 = vmatpush.bf16.msra.mxu0 0
          %1045 = vmatpush.bf16.msra.mxu0 %v1032
          %1046 = vmatpush.bf16.msra.mxu0 %v1031
          %1047 = vmatmul.bf16.gmra.mxu0 %v1037
          %v1048 = vpop.f32.mrf.mxu0
          %v1049 = vadd.f32 0.0, %v1048
          %v1050 = vpop.f32.mrf.mxu0
          %v1051 = vadd.f32 0.0, %v1050
          %1052 = vdwg.mxu0
          %v1057 = vunpack.c.l.b16 %v976
          %v1058 = vunpack.c.l.b16 %v977
          %v1059 = vunpack.c.l.b16 %v978
          %v1060 = vunpack.c.l.b16 %v979
          %v1061 = vpack.c.b16 %v1058, %v1057
          %v1062 = vpack.c.b16 %v1060, %v1059
          %v1065 = vsel %vm1035, %v1008, 0
          %1067 = vmatpush.bf16.msra.mxu0 0
          %1068 = vmatpush.bf16.msra.mxu0 0
          %1069 = vmatpush.bf16.msra.mxu0 0
          %1070 = vmatpush.bf16.msra.mxu0 0
          %1071 = vmatpush.bf16.msra.mxu0 0
          %1072 = vmatpush.bf16.msra.mxu0 0
          %1073 = vmatpush.bf16.msra.mxu0 %v1062
          %1074 = vmatpush.bf16.msra.mxu0 %v1061
          %1075 = vmatmul.bf16.gmra.mxu0 %v1065
          %v1076 = vpop.f32.mrf.mxu0
          %v1077 = vadd.f32 %v1049, %v1076
          %v1078 = vpop.f32.mrf.mxu0
          %v1079 = vadd.f32 %v1051, %v1078
          %1080 = vdwg.mxu0
          %vm1083 = vcmask 1046528
          %v1084 = vrot.slane %v1008, 1
          %v1085 = vrot.slane %v1009, 1
          %v1086 = vsel %vm1083, %v1084, %v1085
          %v1091 = vunpack.c.l.b16 %v984
          %v1092 = vunpack.c.l.b16 %v985
          %v1093 = vunpack.c.l.b16 %v986
          %v1094 = vunpack.c.l.b16 %v987
          %v1095 = vpack.c.b16 %v1092, %v1091
          %v1096 = vpack.c.b16 %v1094, %v1093
          %v1100 = vsel %vm1035, %v1086, 0
          %1102 = vmatpush.bf16.msra.mxu0 0
          %1103 = vmatpush.bf16.msra.mxu0 0
          %1104 = vmatpush.bf16.msra.mxu0 0
          %1105 = vmatpush.bf16.msra.mxu0 0
          %1106 = vmatpush.bf16.msra.mxu0 0
          %1107 = vmatpush.bf16.msra.mxu0 0
          %1108 = vmatpush.bf16.msra.mxu0 %v1096
          %1109 = vmatpush.bf16.msra.mxu0 %v1095
          %1110 = vmatmul.bf16.gmra.mxu0 %v1100
          %v1111 = vpop.f32.mrf.mxu0
          %v1112 = vadd.f32 0.0, %v1111
          %v1113 = vpop.f32.mrf.mxu0
          %v1114 = vadd.f32 0.0, %v1113
          %1115 = vdwg.mxu0
          %v1116 = vadd.f32 %v1077, %v1112
          %v1117 = vadd.f32 %v1079, %v1114
          %v1119 = vperm.slane %v988, 0
          %v1121 = vadd.f32 %v1116, %v1119
          %v1122 = vadd.f32 %v1117, %v1119
          %v1123 = vmax.f32 %v1121, 0.0
          %v1124 = vmax.f32 %v1122, 0.0
          %v1125 = vand.u32 2147483647, %v1121
          %v1126 = vand.u32 2147483647, %v1122
          %v1127 = vsub.f32 0.0, %v1125
          %v1128 = vsub.f32 0.0, %v1126
          %v1129 = vmul.f32 %v1127, 1.442695
          %v1130 = vpow.pop %v1129
          %v1131 = vmul.f32 %v1128, 1.442695
          %v1132 = vpow.pop %v1131
          %v1133 = vadd.f32 %v1130, 1.0
          %v1134 = vadd.f32 %v1132, 1.0
          %v1135 = vlog2.pop %v1133
          %v1136 = vmul.f32 %v1135, 0.6931472
          %v1137 = vlog2.pop %v1134
          %v1138 = vmul.f32 %v1137, 0.6931472
          %v1139 = vadd.f32 %v1123, %v1136
          %v1140 = vadd.f32 %v1124, %v1138
          %v1141 = vtanh.pop %v1139
          %v1142 = vtanh.pop %v1140
          %v1143 = vmul.f32 %v1121, %v1141
          %v1144 = vmul.f32 %v1122, %v1142
          %v1145 = vld [vmem:[%s6] sm:$0xf]
          %v1146 = vld [vmem:[%s6 + $0x4] sm:$0xf]
          %v1147 = vld [vmem:[%s6 + $0x8] sm:$0xf]
          %v1148 = vld [vmem:[%s6 + $0xc] sm:$0xf]
          %v1149 = vld [vmem:[%s6 + $0x10] sm:$0xf]
          %v1150 = vld [vmem:[%s6 + $0x14] sm:$0xf]
          %v1151 = vld [vmem:[%s6 + $0x18] sm:$0xf]
          %v1152 = vld [vmem:[%s6 + $0x1c] sm:$0xf]
          %v1153 = vld [vmem:[%s6 + $0x20] sm:$0xf]
          %v1154 = vld [vmem:[%s6 + $0x24] sm:$0xf]
          %v1155 = vld [vmem:[%s6 + $0x28] sm:$0xf]
          %v1156 = vld [vmem:[%s6 + $0x2c] sm:$0xf]
          %v1157 = vld [vmem:[#allocation8] sm:$0x1]
          %v1158 = vpack.c.bf16 %v1143, %v1143
          %v1159 = vpack.c.bf16 %v1144, %v1144
          %v1162 = vunpack.c.l.b16 %v1158
          %v1163 = vunpack.c.l.b16 %v1159
          %v1164 = vpack.c.b16 %v1163, %v1162
          %v1166 = vshrl.u32 %v1164, 16
          %v1168 = vrot.slane %v1166, 7
          %v1169 = vshll.u32 %v1164, 16
          %v1171 = vor.u32 %v1168, %v1169
          %v1174 = vsel %vm1007, 0, %v1171
          %v1175 = vsel %vm1007, %v1168, 0
          %v1177 = vshrl.u32 %v1174, 16
          %v1179 = vshll.u32 %v1174, 16
          %v1181 = vrot.slane %v1179, 1
          %v1182 = vor.u32 %v1177, %v1181
          %v1184 = vshll.u32 %v1175, 16
          %v1186 = vrot.slane %v1184, 1
          %v1187 = vsel %vm1010, %v1182, %v1186
          %v1192 = vunpack.c.l.b16 %v1149
          %v1193 = vunpack.c.l.b16 %v1150
          %v1194 = vunpack.c.l.b16 %v1151
          %v1195 = vunpack.c.l.b16 %v1152
          %v1196 = vpack.c.b16 %v1193, %v1192
          %v1197 = vpack.c.b16 %v1195, %v1194
          %v1201 = vsel %vm1035, %v1187, 0
          %1203 = vmatpush.bf16.msra.mxu0 0
          %1204 = vmatpush.bf16.msra.mxu0 0
          %1205 = vmatpush.bf16.msra.mxu0 0
          %1206 = vmatpush.bf16.msra.mxu0 0
          %1207 = vmatpush.bf16.msra.mxu0 0
          %1208 = vmatpush.bf16.msra.mxu0 0
          %1209 = vmatpush.bf16.msra.mxu0 %v1197
          %1210 = vmatpush.bf16.msra.mxu0 %v1196
          %1211 = vmatmul.bf16.gmra.mxu0 %v1201
          %v1212 = vpop.f32.mrf.mxu0
          %v1213 = vadd.f32 0.0, %v1212
          %v1214 = vpop.f32.mrf.mxu0
          %v1215 = vadd.f32 0.0, %v1214
          %1216 = vdwg.mxu0
          %v1221 = vunpack.c.l.b16 %v1145
          %v1222 = vunpack.c.l.b16 %v1146
          %v1223 = vunpack.c.l.b16 %v1147
          %v1224 = vunpack.c.l.b16 %v1148
          %v1225 = vpack.c.b16 %v1222, %v1221
          %v1226 = vpack.c.b16 %v1224, %v1223
          %v1229 = vsel %vm1035, %v1174, 0
          %1231 = vmatpush.bf16.msra.mxu0 0
          %1232 = vmatpush.bf16.msra.mxu0 0
          %1233 = vmatpush.bf16.msra.mxu0 0
          %1234 = vmatpush.bf16.msra.mxu0 0
          %1235 = vmatpush.bf16.msra.mxu0 0
          %1236 = vmatpush.bf16.msra.mxu0 0
          %1237 = vmatpush.bf16.msra.mxu0 %v1226
          %1238 = vmatpush.bf16.msra.mxu0 %v1225
          %1239 = vmatmul.bf16.gmra.mxu0 %v1229
          %v1240 = vpop.f32.mrf.mxu0
          %v1241 = vadd.f32 %v1213, %v1240
          %v1242 = vpop.f32.mrf.mxu0
          %v1243 = vadd.f32 %v1215, %v1242
          %1244 = vdwg.mxu0
          %v1247 = vrot.slane %v1174, 1
          %v1248 = vrot.slane %v1175, 1
          %v1249 = vsel %vm1083, %v1247, %v1248
          %v1254 = vunpack.c.l.b16 %v1153
          %v1255 = vunpack.c.l.b16 %v1154
          %v1256 = vunpack.c.l.b16 %v1155
          %v1257 = vunpack.c.l.b16 %v1156
          %v1258 = vpack.c.b16 %v1255, %v1254
          %v1259 = vpack.c.b16 %v1257, %v1256
          %v1263 = vsel %vm1035, %v1249, 0
          %1265 = vmatpush.bf16.msra.mxu0 0
          %1266 = vmatpush.bf16.msra.mxu0 0
          %1267 = vmatpush.bf16.msra.mxu0 0
          %1268 = vmatpush.bf16.msra.mxu0 0
          %1269 = vmatpush.bf16.msra.mxu0 0
          %1270 = vmatpush.bf16.msra.mxu0 0
          %1271 = vmatpush.bf16.msra.mxu0 %v1259
          %1272 = vmatpush.bf16.msra.mxu0 %v1258
          %1273 = vmatmul.bf16.gmra.mxu0 %v1263
          %v1274 = vpop.f32.mrf.mxu0
          %v1275 = vadd.f32 0.0, %v1274
          %v1276 = vpop.f32.mrf.mxu0
          %v1277 = vadd.f32 0.0, %v1276
          %1278 = vdwg.mxu0
          %v1279 = vadd.f32 %v1241, %v1275
          %v1280 = vadd.f32 %v1243, %v1277
          %v1282 = vperm.slane %v1157, 0
          %v1284 = vadd.f32 %v1279, %v1282
          %v1285 = vadd.f32 %v1280, %v1282
          %v1286 = vmax.f32 %v1284, 0.0
          %v1287 = vmax.f32 %v1285, 0.0
          %v1288 = vand.u32 2147483647, %v1284
          %v1289 = vand.u32 2147483647, %v1285
          %v1290 = vsub.f32 0.0, %v1288
          %v1291 = vsub.f32 0.0, %v1289
          %v1292 = vmul.f32 %v1290, 1.442695
          %v1293 = vpow.pop %v1292
          %v1294 = vmul.f32 %v1291, 1.442695
          %v1295 = vpow.pop %v1294
          %v1296 = vadd.f32 %v1293, 1.0
          %v1297 = vadd.f32 %v1295, 1.0
          %v1298 = vlog2.pop %v1296
          %v1299 = vmul.f32 %v1298, 0.6931472
          %v1300 = vlog2.pop %v1297
          %v1301 = vmul.f32 %v1300, 0.6931472
          %v1302 = vadd.f32 %v1286, %v1299
          %v1303 = vadd.f32 %v1287, %v1301
          %v1304 = vtanh.pop %v1302
          %v1305 = vtanh.pop %v1303
          %v1306 = vmul.f32 %v1284, %v1304
          %v1307 = vmul.f32 %v1285, %v1305
          %v1308 = vpack.c.bf16 %v1307, %v1306
          %v1309 = vld [vmem:[#allocation10] sm:$0xf]
          %v1310 = vld [vmem:[#allocation10 + $0x4] sm:$0xf]
          %v1311 = vld [vmem:[#allocation10 + $0x8] sm:$0xf]
          %v1312 = vld [vmem:[#allocation10 + $0xc] sm:$0xf]
          %v1317 = vunpack.c.l.b16 %v1309
          %v1318 = vunpack.c.l.b16 %v1310
          %v1319 = vunpack.c.l.b16 %v1311
          %v1320 = vunpack.c.l.b16 %v1312
          %v1321 = vpack.c.b16 %v1318, %v1317
          %v1322 = vpack.c.b16 %v1320, %v1319
          %v1326 = vsel %vm1035, %v1308, 0
          %1328 = vmatpush.bf16.msra.mxu0 0
          %1329 = vmatpush.bf16.msra.mxu0 0
          %1330 = vmatpush.bf16.msra.mxu0 0
          %1331 = vmatpush.bf16.msra.mxu0 0
          %1332 = vmatpush.bf16.msra.mxu0 0
          %1333 = vmatpush.bf16.msra.mxu0 0
          %1334 = vmatpush.bf16.msra.mxu0 %v1322
          %1335 = vmatpush.bf16.msra.mxu0 %v1321
          %1336 = vmatmul.bf16.gmra.mxu0 %v1326
          %v1337 = vpop.f32.mrf.mxu0
          %v1338 = vadd.f32 0.0, %v1337
          %v1339 = vpop.f32.mrf.mxu0
          %v1340 = vadd.f32 0.0, %v1339
          %1341 = vdwg.mxu0
          %1343 = vset.pattern.permute.xlu0 0
          %1344 = vperm.xlu0 %1343, %v967
          %v1345 = vpop.permute.xlu0 %1344
          %1348 = vset.pattern.permute.xlu0 0
          %1349 = vperm.xlu0 %1348, %v968
          %v1350 = vpop.permute.xlu0 %1349
          %v1352 = vmul.f32 %v1338, %v1345
          %v1353 = vmul.f32 %v1340, %v1350
          %v1354 = vadd.f32 %v974, %v1352
          %v1355 = vadd.f32 %v975, %v1353
          %v1356 = vld [vmem:[%s1] sm:$0xff]
          %v1357 = vld [vmem:[%s1 + $0x8] sm:$0xff]
          %v1358 = vadd.f32 %v1354, %v1356
          %v1359 = vadd.f32 %v1355, %v1357
          %1360 = vst.msk [vmem:[%s955] sm:$0xff] %vm1035, %v1358
          %1361 = vst.msk [vmem:[%s955 + $0x8] sm:$0xff] %vm1035, %v1359
        $region140: #{tpu_custom_call.1} parent=87 // pred_fallthru
          _
        %v1362 = vld [vmem:[%s955] sm:$0xff]
        %v1363 = vld [vmem:[%s955 + $0x8] sm:$0xff]
        %v1364 = vpack.c.bf16 %v1363, %v1362
        %v1365 = vld [vmem:[%s822] sm:$0x1]
        %v1366 = vld [vmem:[%s831] sm:$0x1]
        %v1367 = vld [vmem:[%s803] sm:$0xf]
        %v1368 = vld [vmem:[%s803 + $0x4] sm:$0xf]
        %v1369 = vld [vmem:[%s803 + $0x8] sm:$0xf]
        %v1370 = vld [vmem:[%s803 + $0xc] sm:$0xf]
        %v1375 = vunpack.c.l.b16 %v1367
        %v1376 = vunpack.c.l.b16 %v1368
        %v1377 = vunpack.c.l.b16 %v1369
        %v1378 = vunpack.c.l.b16 %v1370
        %v1379 = vpack.c.b16 %v1376, %v1375
        %v1380 = vpack.c.b16 %v1378, %v1377
        %vm1383 = vcmask 261120
        %v1385 = vsel %vm1383, %v1364, 0
        %1387 = vmatpush.bf16.msra.mxu0 0
        %1388 = vmatpush.bf16.msra.mxu0 0
        %1389 = vmatpush.bf16.msra.mxu0 0
        %1390 = vmatpush.bf16.msra.mxu0 0
        %1391 = vmatpush.bf16.msra.mxu0 0
        %1392 = vmatpush.bf16.msra.mxu0 0
        %1393 = vmatpush.bf16.msra.mxu0 %v1380
        %1394 = vmatpush.bf16.msra.mxu0 %v1379
        %1395 = vmatmul.bf16.gmra.mxu0 %v1385
        %v1396 = vpop.f32.mrf.mxu0
        %v1397 = vadd.f32 0.0, %v1396
        %v1398 = vpop.f32.mrf.mxu0
        %v1399 = vadd.f32 0.0, %v1398
        %1400 = vdwg.mxu0
        %v1401 = vpack.c.bf16 %v1397, %v1397
        %v1402 = vpack.c.bf16 %v1399, %v1399
        %v1405 = vunpack.c.l.b16 %v1401
        %v1406 = vunpack.c.l.b16 %v1402
        %v1407 = vpack.c.b16 %v1406, %v1405
        %1408 = vrot.lane.b32.xlu0 %v1407, 96
        %v1409 = vpop.permute.xlu0 %1408
        %vm1410 = vcmask 130048
        %v1412 = vsel %vm1410, %v1407, 0
        %v1415 = vsel %vm1410, %v1409, 0
        %1417 = vmatpush.bf16.xpose.msra.mxu0 0
        %1418 = vmatpush.bf16.xpose.msra.mxu0 0
        %1419 = vmatpush.bf16.xpose.msra.mxu0 0
        %1420 = vmatpush.bf16.xpose.msra.mxu0 0
        %1421 = vmatpush.bf16.xpose.msra.mxu0 0
        %1422 = vmatpush.bf16.xpose.msra.mxu0 0
        %1423 = vmatpush.bf16.xpose.msra.mxu0 0
        %1424 = vmatpush.bf16.xpose.msra.mxu0 %v1415
        %1425 = vmatmul.bf16.gmra.mxu0 %v1412
        %v1426 = vpop.f32.mrf.mxu0
        %v1427 = vadd.f32 0.0, %v1426
        %v1428 = vpop.f32.mrf.mxu0
        %v1429 = vadd.f32 0.0, %v1428
        %1430 = vdwg.mxu0
        %v1431 = vmul.f32 %v1427, 0.25
        %v1432 = vmul.f32 %v1429, 0.25
        %v1434 = vperm.slane %v969, 0
        %v1436 = vadd.f32 %v1431, %v1434
        %v1437 = vadd.f32 %v1432, %v1434
        %v1438 = vsel %vm1410, %v1436, -inf
        %1439 = vmax.xlane.f32.xlu0 %v1438
        %v1440 = vpop.xlane.xlu0 %1439
        %v1441 = vsel %vm1410, %v1437, -inf
        %1442 = vmax.xlane.f32.xlu0 %v1441
        %v1443 = vpop.xlane.xlu0 %1442
        %v1444 = vsub.f32 %v1436, %v1440
        %v1445 = vsub.f32 %v1437, %v1443
        %v1446 = vmul.f32 %v1444, 1.442695
        %v1447 = vpow.pop %v1446
        %v1448 = vmul.f32 %v1445, 1.442695
        %v1449 = vpow.pop %v1448
        %v1450 = vsel %vm1410, %v1447, 0.0
        %1451 = vadd.xlane.f32.xlu0 %v1450
        %v1452 = vpop.xlane.xlu0 %1451
        %v1453 = vsel %vm1410, %v1449, 0.0
        %1454 = vadd.xlane.f32.xlu0 %v1453
        %v1455 = vpop.xlane.xlu0 %1454
        %v1456 = vrcp.pop %v1452
        %v1457 = vrcp.pop %v1455
        %v1458 = vmul.f32 %v1447, %v1456
        %v1459 = vmul.f32 %v1449, %v1457
        %v1460 = vpack.c.bf16 %v1458, %v1458
        %v1461 = vpack.c.bf16 %v1459, %v1459
        %v1464 = vunpack.c.l.b16 %v1460
        %v1465 = vunpack.c.l.b16 %v1461
        %v1466 = vpack.c.b16 %v1465, %v1464
        %1467 = vrot.lane.b32.xlu0 %v1407, 64
        %v1468 = vpop.permute.xlu0 %1467
        %v1471 = vsel %vm1410, %v1466, 0
        %1473 = vmatpush.bf16.msra.mxu0 0
        %1474 = vmatpush.bf16.msra.mxu0 0
        %1475 = vmatpush.bf16.msra.mxu0 0
        %1476 = vmatpush.bf16.msra.mxu0 0
        %1477 = vmatpush.bf16.msra.mxu0 0
        %1478 = vmatpush.bf16.msra.mxu0 0
        %1479 = vmatpush.bf16.msra.mxu0 0
        %1480 = vmatpush.bf16.msra.mxu0 %v1468
        %1481 = vmatmul.bf16.gmra.mxu0 %v1471
        %v1482 = vpop.f32.mrf.mxu0
        %v1483 = vadd.f32 0.0, %v1482
        %v1484 = vpop.f32.mrf.mxu0
        %v1485 = vadd.f32 0.0, %v1484
        %1486 = vdwg.mxu0
        %1487 = vrot.lane.b32.xlu0 %v1407, 112
        %v1488 = vpop.permute.xlu0 %1487
        %1489 = vrot.lane.b32.xlu0 %v1407, 80
        %v1490 = vpop.permute.xlu0 %1489
        %v1492 = vsel %vm1410, %v1488, 0
        %v1495 = vsel %vm1410, %v1490, 0
        %1497 = vmatpush.bf16.xpose.msra.mxu0 0
        %1498 = vmatpush.bf16.xpose.msra.mxu0 0
        %1499 = vmatpush.bf16.xpose.msra.mxu0 0
        %1500 = vmatpush.bf16.xpose.msra.mxu0 0
        %1501 = vmatpush.bf16.xpose.msra.mxu0 0
        %1502 = vmatpush.bf16.xpose.msra.mxu0 0
        %1503 = vmatpush.bf16.xpose.msra.mxu0 0
        %1504 = vmatpush.bf16.xpose.msra.mxu0 %v1495
        %1505 = vmatmul.bf16.gmra.mxu0 %v1492
        %v1506 = vpop.f32.mrf.mxu0
        %v1507 = vadd.f32 0.0, %v1506
        %v1508 = vpop.f32.mrf.mxu0
        %v1509 = vadd.f32 0.0, %v1508
        %1510 = vdwg.mxu0
        %v1511 = vmul.f32 %v1507, 0.25
        %v1512 = vmul.f32 %v1509, 0.25
        %v1513 = vadd.f32 %v1511, %v1434
        %v1514 = vadd.f32 %v1512, %v1434
        %v1515 = vsel %vm1410, %v1513, -inf
        %1516 = vmax.xlane.f32.xlu0 %v1515
        %v1517 = vpop.xlane.xlu0 %1516
        %v1518 = vsel %vm1410, %v1514, -inf
        %1519 = vmax.xlane.f32.xlu0 %v1518
        %v1520 = vpop.xlane.xlu0 %1519
        %v1521 = vsub.f32 %v1513, %v1517
        %v1522 = vsub.f32 %v1514, %v1520
        %v1523 = vmul.f32 %v1521, 1.442695
        %v1524 = vpow.pop %v1523
        %v1525 = vmul.f32 %v1522, 1.442695
        %v1526 = vpow.pop %v1525
        %v1527 = vsel %vm1410, %v1524, 0.0
        %1528 = vadd.xlane.f32.xlu0 %v1527
        %v1529 = vpop.xlane.xlu0 %1528
        %v1530 = vsel %vm1410, %v1526, 0.0
        %1531 = vadd.xlane.f32.xlu0 %v1530
        %v1532 = vpop.xlane.xlu0 %1531
        %v1533 = vrcp.pop %v1529
        %v1534 = vrcp.pop %v1532
        %v1535 = vmul.f32 %v1524, %v1533
        %v1536 = vmul.f32 %v1526, %v1534
        %v1537 = vpack.c.bf16 %v1535, %v1535
        %v1538 = vpack.c.bf16 %v1536, %v1536
        %v1541 = vunpack.c.l.b16 %v1537
        %v1542 = vunpack.c.l.b16 %v1538
        %v1543 = vpack.c.b16 %v1542, %v1541
        %1544 = vrot.lane.b32.xlu0 %v1407, 48
        %v1545 = vpop.permute.xlu0 %1544
        %v1548 = vsel %vm1410, %v1543, 0
        %1550 = vmatpush.bf16.msra.mxu0 0
        %1551 = vmatpush.bf16.msra.mxu0 0
        %1552 = vmatpush.bf16.msra.mxu0 0
        %1553 = vmatpush.bf16.msra.mxu0 0
        %1554 = vmatpush.bf16.msra.mxu0 0
        %1555 = vmatpush.bf16.msra.mxu0 0
        %1556 = vmatpush.bf16.msra.mxu0 0
        %1557 = vmatpush.bf16.msra.mxu0 %v1545
        %1558 = vmatmul.bf16.gmra.mxu0 %v1548
        %v1559 = vpop.f32.mrf.mxu0
        %v1560 = vadd.f32 0.0, %v1559
        %v1561 = vpop.f32.mrf.mxu0
        %v1562 = vadd.f32 0.0, %v1561
        %1563 = vdwg.mxu0
        %1566 = vrot.lane.b32.xlu0 %v1560, 16
        %v1567 = vpop.permute.xlu0 %1566
        %1568 = vrot.lane.b32.xlu0 %v1562, 16
        %v1569 = vpop.permute.xlu0 %1568
        %v1572 = vsel %vm1410, %v1483, %v1567
        %v1573 = vsel %vm1410, %v1485, %v1569
        %v1574 = vpack.c.bf16 %v1573, %v1572
        %v1575 = vld [vmem:[%s813] sm:$0xf]
        %v1576 = vld [vmem:[%s813 + $0x4] sm:$0xf]
        %v1577 = vld [vmem:[%s813 + $0x8] sm:$0xf]
        %v1578 = vld [vmem:[%s813 + $0xc] sm:$0xf]
        %v1583 = vunpack.c.l.b16 %v1575
        %v1584 = vunpack.c.l.b16 %v1576
        %v1585 = vunpack.c.l.b16 %v1577
        %v1586 = vunpack.c.l.b16 %v1578
        %v1587 = vpack.c.b16 %v1584, %v1583
        %v1588 = vpack.c.b16 %v1586, %v1585
        %v1592 = vsel %vm1383, %v1574, 0
        %1594 = vmatpush.bf16.msra.mxu0 0
        %1595 = vmatpush.bf16.msra.mxu0 0
        %1596 = vmatpush.bf16.msra.mxu0 0
        %1597 = vmatpush.bf16.msra.mxu0 0
        %1598 = vmatpush.bf16.msra.mxu0 0
        %1599 = vmatpush.bf16.msra.mxu0 0
        %1600 = vmatpush.bf16.msra.mxu0 %v1588
        %1601 = vmatpush.bf16.msra.mxu0 %v1587
        %1602 = vmatmul.bf16.gmra.mxu0 %v1592
        %v1603 = vpop.f32.mrf.mxu0
        %v1604 = vadd.f32 0.0, %v1603
        %v1605 = vpop.f32.mrf.mxu0
        %v1606 = vadd.f32 0.0, %v1605
        %1607 = vdwg.mxu0
        %v1608 = vadd.f32 %v1362, %v1604
        %v1609 = vadd.f32 %v1363, %v1606
        %v1610 = vsel %vm1383, %v1608, 0.0
        %1611 = vadd.xlane.f32.xlu0 %v1610
        %v1612 = vpop.xlane.xlu0 %1611
        %v1613 = vsel %vm1383, %v1609, 0.0
        %1614 = vadd.xlane.f32.xlu0 %v1613
        %v1615 = vpop.xlane.xlu0 %1614
        %v1616 = vrcp.pop 32.0
        %v1617 = vmul.f32 32.0, %v1616
        %v1618 = vsub.f32 1.0, %v1617
        %v1619 = vmul.f32 %v1616, %v1618
        %v1620 = vadd.f32 %v1616, %v1619
        %vm1621 = vweird.f32 %v1616
        %v1622 = vsel %vm1621, %v1616, %v1620
        %v1623 = vmul.f32 %v1612, %v1622
        %v1624 = vmul.f32 %v1615, %v1622
        %v1625 = vsub.f32 %v1608, %v1623
        %v1626 = vsub.f32 %v1609, %v1624
        %v1627 = vmul.f32 %v1625, %v1625
        %v1628 = vmul.f32 %v1626, %v1626
        %v1629 = vsel %vm1383, %v1627, 0.0
        %1630 = vadd.xlane.f32.xlu0 %v1629
        %v1631 = vpop.xlane.xlu0 %1630
        %v1632 = vsel %vm1383, %v1628, 0.0
        %1633 = vadd.xlane.f32.xlu0 %v1632
        %v1634 = vpop.xlane.xlu0 %1633
        %v1635 = vmul.f32 %v1631, 0.032258064
        %v1636 = vmul.f32 %v1634, 0.032258064
        %v1637 = vadd.f32 %v1635, 1e-12
        %v1638 = vadd.f32 %v1636, 1e-12
        %v1639 = vrsqrt.pop %v1637
        %v1640 = vmul.f32 %v1639, %v1637
        %v1641 = vmul.f32 %v1640, %v1639
        %v1642 = vmul.f32 0.5, %v1641
        %v1643 = vsub.f32 1.5, %v1642
        %v1644 = vmul.f32 %v1639, %v1643
        %vm1645 = vweird.f32 %v1637
        %vm1646 = vweird.f32 %v1639
        %vm1647 = vmor %vm1645, %vm1646
        %v1648 = vsel %vm1647, %v1639, %v1644
        %v1649 = vrsqrt.pop %v1638
        %v1650 = vmul.f32 %v1649, %v1638
        %v1651 = vmul.f32 %v1650, %v1649
        %v1652 = vmul.f32 0.5, %v1651
        %v1653 = vsub.f32 1.5, %v1652
        %v1654 = vmul.f32 %v1649, %v1653
        %vm1655 = vweird.f32 %v1638
        %vm1656 = vweird.f32 %v1649
        %vm1657 = vmor %vm1655, %vm1656
        %v1658 = vsel %vm1657, %v1649, %v1654
        %v1659 = vmul.f32 %v1625, %v1648
        %v1660 = vmul.f32 %v1626, %v1658
        %v1662 = vperm.slane %v1365, 0
        %1666 = vrot.lane.b32.xlu0 %v1659, 32
        %v1667 = vpop.permute.xlu0 %1666
        %1668 = vrot.lane.b32.xlu0 %v1660, 32
        %v1669 = vpop.permute.xlu0 %1668
        %v1672 = vmul.f32 %v1662, %v1667
        %v1673 = vmul.f32 %v1662, %v1669
        %1674 = vrot.lane.b32.xlu0 %v1662, 32
        %v1675 = vpop.permute.xlu0 %1674
        %v1677 = vadd.f32 %v1672, %v1675
        %v1678 = vadd.f32 %v1673, %v1675
        %1680 = vset.pattern.permute.xlu0 0
        %1681 = vperm.xlu0 %1680, %v967
        %v1682 = vpop.permute.xlu0 %1681
        %1685 = vset.pattern.permute.xlu0 0
        %1686 = vperm.xlu0 %1685, %v968
        %v1687 = vpop.permute.xlu0 %1686
        %v1689 = vmul.f32 %v1677, %v1682
        %v1690 = vmul.f32 %v1678, %v1687
        %v1691 = vld [vmem:[%s841] sm:$0xf]
        %v1692 = vld [vmem:[%s841 + $0x4] sm:$0xf]
        %v1693 = vld [vmem:[%s841 + $0x8] sm:$0xf]
        %v1694 = vld [vmem:[%s841 + $0xc] sm:$0xf]
        %v1695 = vld [vmem:[%s841 + $0x10] sm:$0xf]
        %v1696 = vld [vmem:[%s841 + $0x14] sm:$0xf]
        %v1697 = vld [vmem:[%s841 + $0x18] sm:$0xf]
        %v1698 = vld [vmem:[%s841 + $0x1c] sm:$0xf]
        %v1699 = vld [vmem:[%s841 + $0x20] sm:$0xf]
        %v1700 = vld [vmem:[%s841 + $0x24] sm:$0xf]
        %v1701 = vld [vmem:[%s841 + $0x28] sm:$0xf]
        %v1702 = vld [vmem:[%s841 + $0x2c] sm:$0xf]
        %v1703 = vld [vmem:[%s841 + $0x30] sm:$0xf]
        %v1704 = vld [vmem:[%s841 + $0x34] sm:$0xf]
        %v1705 = vld [vmem:[%s841 + $0x38] sm:$0xf]
        %v1706 = vld [vmem:[%s841 + $0x3c] sm:$0xf]
        %v1707 = vld [vmem:[%s841 + $0x40] sm:$0xf]
        %v1708 = vld [vmem:[%s841 + $0x44] sm:$0xf]
        %v1709 = vld [vmem:[%s841 + $0x48] sm:$0xf]
        %v1710 = vld [vmem:[%s841 + $0x4c] sm:$0xf]
        %v1711 = vld [vmem:[%s841 + $0x50] sm:$0xf]
        %v1712 = vld [vmem:[%s841 + $0x54] sm:$0xf]
        %v1713 = vld [vmem:[%s841 + $0x58] sm:$0xf]
        %v1714 = vld [vmem:[%s841 + $0x5c] sm:$0xf]
        %v1715 = vld [vmem:[%s841 + $0x60] sm:$0xf]
        %v1716 = vld [vmem:[%s841 + $0x64] sm:$0xf]
        %v1717 = vld [vmem:[%s841 + $0x68] sm:$0xf]
        %v1718 = vld [vmem:[%s841 + $0x6c] sm:$0xf]
        %v1719 = vld [vmem:[%s841 + $0x70] sm:$0xf]
        %v1720 = vld [vmem:[%s841 + $0x74] sm:$0xf]
        %v1721 = vld [vmem:[%s841 + $0x78] sm:$0xf]
        %v1722 = vld [vmem:[%s841 + $0x7c] sm:$0xf]
        %v1723 = vld [vmem:[%s841 + $0x80] sm:$0xf]
        %v1724 = vld [vmem:[%s841 + $0x84] sm:$0xf]
        %v1725 = vld [vmem:[%s841 + $0x88] sm:$0xf]
        %v1726 = vld [vmem:[%s841 + $0x8c] sm:$0xf]
        %v1727 = vld [vmem:[%s850] sm:$0x1]
        %v1728 = vpack.c.bf16 %v1689, %v1689
        %v1729 = vpack.c.bf16 %v1690, %v1690
        %v1732 = vunpack.c.l.b16 %v1728
        %v1733 = vunpack.c.l.b16 %v1729
        %v1734 = vpack.c.b16 %v1733, %v1732
        %v1735 = vrot.slane %v1734, 6
        %1736 = vrot.lane.b32.xlu0 %v1735, 96
        %v1737 = vpop.permute.xlu0 %1736
        %vm1738 = vcmask 1041408
        %v1741 = vsel %vm1738, 0, %v1737
        %v1742 = vsel %vm1738, %v1737, 0
        %vm1743 = vsmask.f32 7424
        %v1744 = vshrl.u32 %v1741, 16
        %v1746 = vshll.u32 %v1741, 16
        %v1748 = vrot.slane %v1746, 1
        %v1749 = vor.u32 %v1744, %v1748
        %v1750 = vshll.u32 %v1742, 16
        %v1752 = vrot.slane %v1750, 1
        %v1753 = vsel %vm1743, %v1749, %v1752
        %v1758 = vunpack.c.l.b16 %v1695
        %v1759 = vunpack.c.l.b16 %v1696
        %v1760 = vunpack.c.l.b16 %v1697
        %v1761 = vunpack.c.l.b16 %v1698
        %v1762 = vpack.c.b16 %v1759, %v1758
        %v1763 = vpack.c.b16 %v1761, %v1760
        %v1767 = vsel %vm1383, %v1753, 0
        %1769 = vmatpush.bf16.msra.mxu0 0
        %1770 = vmatpush.bf16.msra.mxu0 0
        %1771 = vmatpush.bf16.msra.mxu0 0
        %1772 = vmatpush.bf16.msra.mxu0 0
        %1773 = vmatpush.bf16.msra.mxu0 0
        %1774 = vmatpush.bf16.msra.mxu0 0
        %1775 = vmatpush.bf16.msra.mxu0 %v1763
        %1776 = vmatpush.bf16.msra.mxu0 %v1762
        %1777 = vmatmul.bf16.gmra.mxu0 %v1767
        %v1778 = vpop.f32.mrf.mxu0
        %v1779 = vadd.f32 0.0, %v1778
        %v1780 = vpop.f32.mrf.mxu0
        %v1781 = vadd.f32 0.0, %v1780
        %1782 = vdwg.mxu0
        %v1787 = vunpack.c.l.b16 %v1691
        %v1788 = vunpack.c.l.b16 %v1692
        %v1789 = vunpack.c.l.b16 %v1693
        %v1790 = vunpack.c.l.b16 %v1694
        %v1791 = vpack.c.b16 %v1788, %v1787
        %v1792 = vpack.c.b16 %v1790, %v1789
        %v1795 = vsel %vm1383, %v1741, 0
        %1797 = vmatpush.bf16.msra.mxu0 0
        %1798 = vmatpush.bf16.msra.mxu0 0
        %1799 = vmatpush.bf16.msra.mxu0 0
        %1800 = vmatpush.bf16.msra.mxu0 0
        %1801 = vmatpush.bf16.msra.mxu0 0
        %1802 = vmatpush.bf16.msra.mxu0 0
        %1803 = vmatpush.bf16.msra.mxu0 %v1792
        %1804 = vmatpush.bf16.msra.mxu0 %v1791
        %1805 = vmatmul.bf16.gmra.mxu0 %v1795
        %v1806 = vpop.f32.mrf.mxu0
        %v1807 = vadd.f32 %v1779, %v1806
        %v1808 = vpop.f32.mrf.mxu0
        %v1809 = vadd.f32 %v1781, %v1808
        %1810 = vdwg.mxu0
        %vm1813 = vcmask 1046528
        %v1814 = vrot.slane %v1741, 1
        %v1815 = vrot.slane %v1742, 1
        %v1816 = vsel %vm1813, %v1814, %v1815
        %v1821 = vunpack.c.l.b16 %v1699
        %v1822 = vunpack.c.l.b16 %v1700
        %v1823 = vunpack.c.l.b16 %v1701
        %v1824 = vunpack.c.l.b16 %v1702
        %v1825 = vpack.c.b16 %v1822, %v1821
        %v1826 = vpack.c.b16 %v1824, %v1823
        %v1830 = vsel %vm1383, %v1816, 0
        %1832 = vmatpush.bf16.msra.mxu0 0
        %1833 = vmatpush.bf16.msra.mxu0 0
        %1834 = vmatpush.bf16.msra.mxu0 0
        %1835 = vmatpush.bf16.msra.mxu0 0
        %1836 = vmatpush.bf16.msra.mxu0 0
        %1837 = vmatpush.bf16.msra.mxu0 0
        %1838 = vmatpush.bf16.msra.mxu0 %v1826
        %1839 = vmatpush.bf16.msra.mxu0 %v1825
        %1840 = vmatmul.bf16.gmra.mxu0 %v1830
        %v1841 = vpop.f32.mrf.mxu0
        %v1842 = vadd.f32 0.0, %v1841
        %v1843 = vpop.f32.mrf.mxu0
        %v1844 = vadd.f32 0.0, %v1843
        %1845 = vdwg.mxu0
        %v1846 = vadd.f32 %v1807, %v1842
        %v1847 = vadd.f32 %v1809, %v1844
        %vm1848 = vsmask.f32 6400
        %v1849 = vrot.slane %v1744, 1
        %v1850 = vrot.slane %v1746, 2
        %v1851 = vor.u32 %v1849, %v1850
        %v1852 = vshrl.u32 %v1742, 16
        %v1854 = vrot.slane %v1852, 1
        %v1855 = vrot.slane %v1750, 2
        %v1856 = vor.u32 %v1854, %v1855
        %v1857 = vsel %vm1848, %v1851, %v1856
        %v1862 = vunpack.c.l.b16 %v1703
        %v1863 = vunpack.c.l.b16 %v1704
        %v1864 = vunpack.c.l.b16 %v1705
        %v1865 = vunpack.c.l.b16 %v1706
        %v1866 = vpack.c.b16 %v1863, %v1862
        %v1867 = vpack.c.b16 %v1865, %v1864
        %v1871 = vsel %vm1383, %v1857, 0
        %1873 = vmatpush.bf16.msra.mxu0 0
        %1874 = vmatpush.bf16.msra.mxu0 0
        %1875 = vmatpush.bf16.msra.mxu0 0
        %1876 = vmatpush.bf16.msra.mxu0 0
        %1877 = vmatpush.bf16.msra.mxu0 0
        %1878 = vmatpush.bf16.msra.mxu0 0
        %1879 = vmatpush.bf16.msra.mxu0 %v1867
        %1880 = vmatpush.bf16.msra.mxu0 %v1866
        %1881 = vmatmul.bf16.gmra.mxu0 %v1871
        %v1882 = vpop.f32.mrf.mxu0
        %v1883 = vadd.f32 0.0, %v1882
        %v1884 = vpop.f32.mrf.mxu0
        %v1885 = vadd.f32 0.0, %v1884
        %1886 = vdwg.mxu0
        %v1887 = vadd.f32 %v1846, %v1883
        %v1888 = vadd.f32 %v1847, %v1885
        %vm1889 = vcmask 1045504
        %v1890 = vrot.slane %v1741, 2
        %v1891 = vrot.slane %v1742, 2
        %v1892 = vsel %vm1889, %v1890, %v1891
        %v1897 = vunpack.c.l.b16 %v1707
        %v1898 = vunpack.c.l.b16 %v1708
        %v1899 = vunpack.c.l.b16 %v1709
        %v1900 = vunpack.c.l.b16 %v1710
        %v1901 = vpack.c.b16 %v1898, %v1897
        %v1902 = vpack.c.b16 %v1900, %v1899
        %v1906 = vsel %vm1383, %v1892, 0
        %1908 = vmatpush.bf16.msra.mxu0 0
        %1909 = vmatpush.bf16.msra.mxu0 0
        %1910 = vmatpush.bf16.msra.mxu0 0
        %1911 = vmatpush.bf16.msra.mxu0 0
        %1912 = vmatpush.bf16.msra.mxu0 0
        %1913 = vmatpush.bf16.msra.mxu0 0
        %1914 = vmatpush.bf16.msra.mxu0 %v1902
        %1915 = vmatpush.bf16.msra.mxu0 %v1901
        %1916 = vmatmul.bf16.gmra.mxu0 %v1906
        %v1917 = vpop.f32.mrf.mxu0
        %v1918 = vadd.f32 0.0, %v1917
        %v1919 = vpop.f32.mrf.mxu0
        %v1920 = vadd.f32 0.0, %v1919
        %1921 = vdwg.mxu0
        %v1922 = vadd.f32 %v1887, %v1918
        %v1923 = vadd.f32 %v1888, %v1920
        %vm1924 = vsmask.f32 5376
        %v1925 = vrot.slane %v1744, 2
        %v1926 = vrot.slane %v1746, 3
        %v1927 = vor.u32 %v1925, %v1926
        %v1928 = vrot.slane %v1852, 2
        %v1929 = vrot.slane %v1750, 3
        %v1930 = vor.u32 %v1928, %v1929
        %v1931 = vsel %vm1924, %v1927, %v1930
        %v1936 = vunpack.c.l.b16 %v1711
        %v1937 = vunpack.c.l.b16 %v1712
        %v1938 = vunpack.c.l.b16 %v1713
        %v1939 = vunpack.c.l.b16 %v1714
        %v1940 = vpack.c.b16 %v1937, %v1936
        %v1941 = vpack.c.b16 %v1939, %v1938
        %v1945 = vsel %vm1383, %v1931, 0
        %1947 = vmatpush.bf16.msra.mxu0 0
        %1948 = vmatpush.bf16.msra.mxu0 0
        %1949 = vmatpush.bf16.msra.mxu0 0
        %1950 = vmatpush.bf16.msra.mxu0 0
        %1951 = vmatpush.bf16.msra.mxu0 0
        %1952 = vmatpush.bf16.msra.mxu0 0
        %1953 = vmatpush.bf16.msra.mxu0 %v1941
        %1954 = vmatpush.bf16.msra.mxu0 %v1940
        %1955 = vmatmul.bf16.gmra.mxu0 %v1945
        %v1956 = vpop.f32.mrf.mxu0
        %v1957 = vadd.f32 0.0, %v1956
        %v1958 = vpop.f32.mrf.mxu0
        %v1959 = vadd.f32 0.0, %v1958
        %1960 = vdwg.mxu0
        %v1961 = vadd.f32 %v1922, %v1957
        %v1962 = vadd.f32 %v1923, %v1959
        %vm1963 = vcmask 1044480
        %v1964 = vrot.slane %v1741, 3
        %v1965 = vrot.slane %v1742, 3
        %v1966 = vsel %vm1963, %v1964, %v1965
        %v1971 = vunpack.c.l.b16 %v1715
        %v1972 = vunpack.c.l.b16 %v1716
        %v1973 = vunpack.c.l.b16 %v1717
        %v1974 = vunpack.c.l.b16 %v1718
        %v1975 = vpack.c.b16 %v1972, %v1971
        %v1976 = vpack.c.b16 %v1974, %v1973
        %v1980 = vsel %vm1383, %v1966, 0
        %1982 = vmatpush.bf16.msra.mxu0 0
        %1983 = vmatpush.bf16.msra.mxu0 0
        %1984 = vmatpush.bf16.msra.mxu0 0
        %1985 = vmatpush.bf16.msra.mxu0 0
        %1986 = vmatpush.bf16.msra.mxu0 0
        %1987 = vmatpush.bf16.msra.mxu0 0
        %1988 = vmatpush.bf16.msra.mxu0 %v1976
        %1989 = vmatpush.bf16.msra.mxu0 %v1975
        %1990 = vmatmul.bf16.gmra.mxu0 %v1980
        %v1991 = vpop.f32.mrf.mxu0
        %v1992 = vadd.f32 0.0, %v1991
        %v1993 = vpop.f32.mrf.mxu0
        %v1994 = vadd.f32 0.0, %v1993
        %1995 = vdwg.mxu0
        %v1996 = vadd.f32 %v1961, %v1992
        %v1997 = vadd.f32 %v1962, %v1994
        %vm1998 = vsmask.f32 4352
        %v1999 = vrot.slane %v1744, 3
        %v2000 = vrot.slane %v1746, 4
        %v2001 = vor.u32 %v1999, %v2000
        %v2002 = vrot.slane %v1852, 3
        %v2003 = vrot.slane %v1750, 4
        %v2004 = vor.u32 %v2002, %v2003
        %v2005 = vsel %vm1998, %v2001, %v2004
        %v2010 = vunpack.c.l.b16 %v1719
        %v2011 = vunpack.c.l.b16 %v1720
        %v2012 = vunpack.c.l.b16 %v1721
        %v2013 = vunpack.c.l.b16 %v1722
        %v2014 = vpack.c.b16 %v2011, %v2010
        %v2015 = vpack.c.b16 %v2013, %v2012
        %v2019 = vsel %vm1383, %v2005, 0
        %2021 = vmatpush.bf16.msra.mxu0 0
        %2022 = vmatpush.bf16.msra.mxu0 0
        %2023 = vmatpush.bf16.msra.mxu0 0
        %2024 = vmatpush.bf16.msra.mxu0 0
        %2025 = vmatpush.bf16.msra.mxu0 0
        %2026 = vmatpush.bf16.msra.mxu0 0
        %2027 = vmatpush.bf16.msra.mxu0 %v2015
        %2028 = vmatpush.bf16.msra.mxu0 %v2014
        %2029 = vmatmul.bf16.gmra.mxu0 %v2019
        %v2030 = vpop.f32.mrf.mxu0
        %v2031 = vadd.f32 0.0, %v2030
        %v2032 = vpop.f32.mrf.mxu0
        %v2033 = vadd.f32 0.0, %v2032
        %2034 = vdwg.mxu0
        %v2035 = vadd.f32 %v1996, %v2031
        %v2036 = vadd.f32 %v1997, %v2033
        %vm2037 = vcmask 1043456
        %v2038 = vrot.slane %v1741, 4
        %v2039 = vrot.slane %v1742, 4
        %v2040 = vsel %vm2037, %v2038, %v2039
        %v2045 = vunpack.c.l.b16 %v1723
        %v2046 = vunpack.c.l.b16 %v1724
        %v2047 = vunpack.c.l.b16 %v1725
        %v2048 = vunpack.c.l.b16 %v1726
        %v2049 = vpack.c.b16 %v2046, %v2045
        %v2050 = vpack.c.b16 %v2048, %v2047
        %v2054 = vsel %vm1383, %v2040, 0
        %2056 = vmatpush.bf16.msra.mxu0 0
        %2057 = vmatpush.bf16.msra.mxu0 0
        %2058 = vmatpush.bf16.msra.mxu0 0
        %2059 = vmatpush.bf16.msra.mxu0 0
        %2060 = vmatpush.bf16.msra.mxu0 0
        %2061 = vmatpush.bf16.msra.mxu0 0
        %2062 = vmatpush.bf16.msra.mxu0 %v2050
        %2063 = vmatpush.bf16.msra.mxu0 %v2049
        %2064 = vmatmul.bf16.gmra.mxu0 %v2054
        %v2065 = vpop.f32.mrf.mxu0
        %v2066 = vadd.f32 0.0, %v2065
        %v2067 = vpop.f32.mrf.mxu0
        %v2068 = vadd.f32 0.0, %v2067
        %2069 = vdwg.mxu0
        %v2070 = vadd.f32 %v2035, %v2066
        %v2071 = vadd.f32 %v2036, %v2068
        %v2073 = vperm.slane %v1727, 0
        %v2075 = vadd.f32 %v2070, %v2073
        %v2076 = vadd.f32 %v2071, %v2073
        %v2077 = vmax.f32 %v2075, 0.0
        %v2078 = vmax.f32 %v2076, 0.0
        %v2079 = vld [vmem:[%s965] sm:$0xf]
        %v2080 = vld [vmem:[%s965 + $0x4] sm:$0xf]
        %v2081 = vld [vmem:[%s965 + $0x8] sm:$0xf]
        %v2082 = vld [vmem:[%s965 + $0xc] sm:$0xf]
        %v2083 = vld [vmem:[%s965 + $0x10] sm:$0xf]
        %v2084 = vld [vmem:[%s965 + $0x14] sm:$0xf]
        %v2085 = vld [vmem:[%s965 + $0x18] sm:$0xf]
        %v2086 = vld [vmem:[%s965 + $0x1c] sm:$0xf]
        %v2087 = vld [vmem:[%s859] sm:$0x1]
        %v2088 = vpack.c.bf16 %v2077, %v2077
        %v2089 = vpack.c.bf16 %v2078, %v2078
        %v2092 = vunpack.c.l.b16 %v2088
        %v2093 = vunpack.c.l.b16 %v2089
        %v2094 = vpack.c.b16 %v2093, %v2092
        %v2103 = vunpack.c.l.b16 %v2079
        %v2104 = vunpack.c.l.b16 %v2080
        %v2105 = vunpack.c.l.b16 %v2081
        %v2106 = vunpack.c.l.b16 %v2082
        %v2107 = vunpack.c.l.b16 %v2083
        %v2108 = vunpack.c.l.b16 %v2084
        %v2109 = vunpack.c.l.b16 %v2085
        %v2110 = vunpack.c.l.b16 %v2086
        %v2111 = vpack.c.b16 %v2104, %v2103
        %v2112 = vpack.c.b16 %v2106, %v2105
        %v2113 = vpack.c.b16 %v2108, %v2107
        %v2114 = vpack.c.b16 %v2110, %v2109
        %vm2119 = vcmask 523264
        %v2121 = vsel %vm2119, %v2094, 0
        %2123 = vmatpush.bf16.msra.mxu0 0
        %2124 = vmatpush.bf16.msra.mxu0 0
        %2125 = vmatpush.bf16.msra.mxu0 0
        %2126 = vmatpush.bf16.msra.mxu0 0
        %2127 = vmatpush.bf16.msra.mxu0 %v2114
        %2128 = vmatpush.bf16.msra.mxu0 %v2113
        %2129 = vmatpush.bf16.msra.mxu0 %v2112
        %2130 = vmatpush.bf16.msra.mxu0 %v2111
        %2131 = vmatmul.bf16.gmra.mxu0 %v2121
        %v2132 = vpop.f32.mrf.mxu0
        %v2133 = vadd.f32 0.0, %v2132
        %v2134 = vpop.f32.mrf.mxu0
        %v2135 = vadd.f32 0.0, %v2134
        %2136 = vdwg.mxu0
        %v2138 = vperm.slane %v2087, 0
        %v2140 = vadd.f32 %v2133, %v2138
        %v2141 = vadd.f32 %v2135, %v2138
        %2144 = vrot.lane.b32.xlu0 %v1689, 96
        %v2145 = vpop.permute.xlu0 %2144
        %2146 = vrot.lane.b32.xlu0 %v1690, 96
        %v2147 = vpop.permute.xlu0 %2146
        %v2150 = vadd.f32 %v2140, %v2145
        %v2151 = vadd.f32 %v2141, %v2147
        %v2152 = vsel %vm1383, %v2150, 0.0
        %2153 = vadd.xlane.f32.xlu0 %v2152
        %v2154 = vpop.xlane.xlu0 %2153
        %v2155 = vsel %vm1383, %v2151, 0.0
        %2156 = vadd.xlane.f32.xlu0 %v2155
        %v2157 = vpop.xlane.xlu0 %2156
        %v2158 = vmul.f32 %v2154, %v1622
        %v2159 = vmul.f32 %v2157, %v1622
        %v2160 = vsub.f32 %v2150, %v2158
        %v2161 = vsub.f32 %v2151, %v2159
        %v2162 = vmul.f32 %v2160, %v2160
        %v2163 = vmul.f32 %v2161, %v2161
        %v2164 = vsel %vm1383, %v2162, 0.0
        %2165 = vadd.xlane.f32.xlu0 %v2164
        %v2166 = vpop.xlane.xlu0 %2165
        %v2167 = vsel %vm1383, %v2163, 0.0
        %2168 = vadd.xlane.f32.xlu0 %v2167
        %v2169 = vpop.xlane.xlu0 %2168
        %v2170 = vmul.f32 %v2166, 0.032258064
        %v2171 = vmul.f32 %v2169, 0.032258064
        %v2172 = vadd.f32 %v2170, 1e-12
        %v2173 = vadd.f32 %v2171, 1e-12
        %v2174 = vrsqrt.pop %v2172
        %v2175 = vmul.f32 %v2174, %v2172
        %v2176 = vmul.f32 %v2175, %v2174
        %v2177 = vmul.f32 0.5, %v2176
        %v2178 = vsub.f32 1.5, %v2177
        %v2179 = vmul.f32 %v2174, %v2178
        %vm2180 = vweird.f32 %v2172
        %vm2181 = vweird.f32 %v2174
        %vm2182 = vmor %vm2180, %vm2181
        %v2183 = vsel %vm2182, %v2174, %v2179
        %v2184 = vrsqrt.pop %v2173
        %v2185 = vmul.f32 %v2184, %v2173
        %v2186 = vmul.f32 %v2185, %v2184
        %v2187 = vmul.f32 0.5, %v2186
        %v2188 = vsub.f32 1.5, %v2187
        %v2189 = vmul.f32 %v2184, %v2188
        %vm2190 = vweird.f32 %v2173
        %vm2191 = vweird.f32 %v2184
        %vm2192 = vmor %vm2190, %vm2191
        %v2193 = vsel %vm2192, %v2184, %v2189
        %v2194 = vmul.f32 %v2160, %v2183
        %v2195 = vmul.f32 %v2161, %v2193
        %v2197 = vperm.slane %v1366, 0
        %2201 = vrot.lane.b32.xlu0 %v2194, 32
        %v2202 = vpop.permute.xlu0 %2201
        %2203 = vrot.lane.b32.xlu0 %v2195, 32
        %v2204 = vpop.permute.xlu0 %2203
        %v2207 = vmul.f32 %v2197, %v2202
        %v2208 = vmul.f32 %v2197, %v2204
        %2209 = vrot.lane.b32.xlu0 %v2197, 32
        %v2210 = vpop.permute.xlu0 %2209
        %v2212 = vadd.f32 %v2207, %v2210
        %v2213 = vadd.f32 %v2208, %v2210
        %v2214 = vmul.f32 %v2212, %v1682
        %v2215 = vmul.f32 %v2213, %v1687
        %2218 = vrot.lane.b32.xlu0 %v2214, 96
        %v2219 = vpop.permute.xlu0 %2218
        %2220 = vrot.lane.b32.xlu0 %v2215, 96
        %v2221 = vpop.permute.xlu0 %2220
        %2224 = vst.msk [vmem:[%s955] sm:$0xff] %vm1383, %v2219
        %2225 = vst.msk [vmem:[%s955 + $0x8] sm:$0xff] %vm1383, %v2221
        %s2226 = sand.u32 %s486, 1
        %s2227 = scalar_lea.sflag [#allocation4], %s2226
        %s2228 = sand.u32 %s486, 1
        %s2229 = smul.addr %s2228, 16
        %s2230 = scalar_lea.vmem [#allocation22], %s2229
        // Predicated region
        $region141: #{tpu_custom_call.1} parent=87 // pred_check
          %p2231 = pneg %p496
        $region142: #{tpu_custom_call.1} parent=87 // pred_check_branch
          %2233 = sbr.rel (%p2231) target = $region144
        $region143: #{tpu_custom_call.1} parent=87 // pred_region
          %2235 = vsyncadd %s2227, 0
          %s2236 = smul.addr %s54, 2
          %s2237 = smul.addr %s2236, 8
          %s2238 = scalar_lea.hbm %s17, %s2237
          %s2239 = sshll.u32 %s2230, 4
          %s2240 = int_to_ptr.vmem [resolvable:$true] %s2239
          %s2241 = sshll.u32 %s2238, 4
          %s2242 = int_to_ptr.hbm [resolvable:$true] %s2241
          %2247 = dma.vmem_to_hbm [thread:$0]  %s2240, 256, %s2242, %s2227, 128, 128, 8
        $region144: #{tpu_custom_call.1} parent=87 // pred_fallthru
          _
      $region88: #{tpu_custom_call.1} parent=5 // pred_fallthru
        _
      %p2248 = scmp.le.s32.totalorder 2, %s45
      // Predicated region
      $region145: #{tpu_custom_call.1} parent=5 // pred_check
        %p2249 = pneg %p2248
      $region146: #{tpu_custom_call.1} parent=5 // pred_check_branch
        %2251 = sbr.rel (%p2249) target = $region148
      $region147: #{tpu_custom_call.1} parent=5 // pred_region
        %s2252 = ssub.s32 %s45, 2
        // Predicated region
        $region149: #{tpu_custom_call.1} parent=147 // pred_check
          %p2253 = pneg %p502
        $region150: #{tpu_custom_call.1} parent=147 // pred_check_branch
          %2255 = sbr.rel (%p2253) target = $region152
        $region151: #{tpu_custom_call.1} parent=147 // pred_region
          %s2256 = sand.u32 %s487, 1
          %s2257 = scalar_lea.sflag [#allocation4], %s2256
          %s2258 = sand.u32 %s487, 1
          %s2259 = smul.addr %s2258, 16
          %s2260 = scalar_lea.vmem [#allocation22], %s2259
          %2262 = dma.done %s2257, 256
        $region152: #{tpu_custom_call.1} parent=147 // pred_fallthru
          _
      $region148: #{tpu_custom_call.1} parent=5 // pred_fallthru
        _
    $region6: #{tpu_custom_call.1} parent=1 // loop_footer
      %s49 = sadd.s32 1, %s45
    $region7: #{tpu_custom_call.1} parent=1 // loop_footer_branch
      %44 = sbr.rel target = $region3
    $region8: #{tpu_custom_call.1} parent=1 // loop_exit
      _
    %2263 = vsyncpa [#allocation3], 1
    %s2264 = scalar_lea.sflag [#allocation3], 1
    %2265 = vsyncpa %s2264, 1
    %2266 = vsyncpa [#allocation6], 1
    %s2267 = scalar_lea.sflag [#allocation6], 1
    %2268 = vsyncpa %s2267, 1
    %2269 = vsyncpa [#allocation9], 1
    %2270 = vsyncpa [#allocation12], 1
    %s2271 = scalar_lea.sflag [#allocation12], 1
    %2272 = vsyncpa %s2271, 1
    %2273 = vsyncpa [#allocation15], 1
    %s2274 = scalar_lea.sflag [#allocation15], 1
    %2275 = vsyncpa %s2274, 1
    %2276 = vsyncpa [#allocation18], 1
    %s2277 = scalar_lea.sflag [#allocation18], 1
    %2278 = vsyncpa %s2277, 1
    %2279 = vsyncpa [#allocation21], 1
    %s2280 = scalar_lea.sflag [#allocation21], 1
    %2281 = vsyncpa %s2280, 1
    %2282 = vsyncpa [#allocation4], 1
    %s2283 = scalar_lea.sflag [#allocation4], 1
    %2284 = vsyncpa %s2283, 1

</llo_original>
